<compile_context>
chip_gen: v6e
topology: v6e:2x2x1
jax: 0.10.0
libtpu: 0.0.40
codegen_flags: <defaults>
</compile_context>

<pallas_src>
import functools

import jax
import jax.numpy as jnp
from jax.experimental import pallas as pl
from jax.experimental.pallas import tpu as pltpu


def decoder_lstm_kernel(x_ref, wih_ref, whh_ref, b_ref, wout_ref, bout_ref,
                        out_ref, gx_ref, hs_ref, *, seq_len, batch):
    """Full-sequence LSTM + output projection in one invocation.

    x_ref   : (T*B, E)    time-major flattened inputs (features at t=0, then words)
    wih_ref : (E, 4H)     input->gates  (PyTorch weight_ih_l0, transposed)
    whh_ref : (H, 4H)     hidden->gates (PyTorch weight_hh_l0, transposed)
    b_ref   : (1, 4H)     bias_ih + bias_hh
    wout_ref: (H, Vpad)   hidden2tag weight, transposed, zero-padded to lane width
    bout_ref: (1, Vpad)   hidden2tag bias, zero-padded
    out_ref : (B*T, Vpad) batch-first flattened logits
    gx_ref  : (T*B, 4H)   scratch: precomputed input contribution to the gates
    hs_ref  : (B*T, H)    scratch: batch-first hidden states
    """
    T, B = seq_len, batch
    H = whh_ref.shape[0]

    # Phase 1: hoisted, batched input->gates matmul (no time dependence).
    gx_ref[...] = (
        jnp.dot(x_ref[...], wih_ref[...], preferred_element_type=jnp.float32)
        + b_ref[...])

    w_hh = whh_ref[...]   # hoist the recurrent weight load out of the time loop

    # Phase 2: serial recurrence -- only h_prev @ W_hh on the critical path.
    def step(t, carry):
        h_prev, c_prev = carry
        row = pl.multiple_of(t * B, B)
        gates = gx_ref[pl.ds(row, B), :] + jnp.dot(
            h_prev, w_hh, preferred_element_type=jnp.float32)        # (B, 4H)
        # PyTorch gate order: i, f, g, o
        i = jax.nn.sigmoid(gates[:, 0 * H:1 * H])
        f = jax.nn.sigmoid(gates[:, 1 * H:2 * H])
        g = jnp.tanh(gates[:, 2 * H:3 * H])
        o = jax.nn.sigmoid(gates[:, 3 * H:4 * H])
        c_new = f * c_prev + i * g
        h_new = o * jnp.tanh(c_new)
        # Scatter this step's hidden rows into the batch-first buffer so the
        # final projection writes lane-dense, batch-first output directly.
        for b in range(B):
            hs_ref[pl.ds(b * T + t, 1), :] = h_new[b:b + 1, :]
        return (h_new, c_new)

    h0 = jnp.zeros((B, H), jnp.float32)   # PyTorch default: zero initial state
    c0 = jnp.zeros((B, H), jnp.float32)
    jax.lax.fori_loop(0, T, step, (h0, c0), unroll=True)

    # Phase 3: one batched hidden2tag projection; single lane-dense store.
    out_ref[...] = (
        jnp.dot(hs_ref[...], wout_ref[...], preferred_element_type=jnp.float32)
        + bout_ref[...]).astype(out_ref.dtype)


def make_params(key, embed_size, hidden_size, vocab_size):
    """Deterministic synthetic parameters matching the PyTorch module's shapes
    (stored in matmul-ready, transposed form)."""
    k_emb, k_wih, k_whh, k_bih, k_bhh, k_wout, k_bout = jax.random.split(key, 7)
    E, H, V = embed_size, hidden_size, vocab_size
    scale = 0.1
    return {
        "embedding": scale * jax.random.normal(k_emb, (V, E), jnp.float32),
        "w_ih": scale * jax.random.normal(k_wih, (E, 4 * H), jnp.float32),
        "w_hh": scale * jax.random.normal(k_whh, (H, 4 * H), jnp.float32),
        "b": (scale * jax.random.normal(k_bih, (1, 4 * H), jnp.float32)
              + scale * jax.random.normal(k_bhh, (1, 4 * H), jnp.float32)),
        "w_out": scale * jax.random.normal(k_wout, (H, V), jnp.float32),
        "b_out": scale * jax.random.normal(k_bout, (1, V), jnp.float32),
    }


@jax.jit
def decoder_forward(features, captions, params):
    """features: (B, E) float32; captions: (B, Tc) int32.  Returns (B, Tc, V)."""
    emb = params["embedding"]                                    # (V, E)
    words = jnp.take(emb, captions[:, :-1], axis=0)              # (B, Tc-1, E)
    x = jnp.concatenate([features[:, None, :], words], axis=1)   # (B, T, E)
    B, T, E = x.shape
    H = params["w_hh"].shape[0]
    V = params["w_out"].shape[1]
    Vpad = ((V + 127) // 128) * 128   # lane-dense output width

    # Time-major flattened input for the recurrence (tiny; input side only).
    x_tm = jnp.transpose(x, (1, 0, 2)).reshape(T * B, E)

    # Zero-pad the projection to the lane-dense width (sliced off below).
    w_out_p = jnp.pad(params["w_out"], ((0, 0), (0, Vpad - V)))
    b_out_p = jnp.pad(params["b_out"], ((0, 0), (0, Vpad - V)))

    kernel = functools.partial(decoder_lstm_kernel, seq_len=T, batch=B)
    out_bf = pl.pallas_call(
        kernel,
        out_shape=jax.ShapeDtypeStruct((B * T, Vpad), jnp.float32),
        in_specs=[pl.BlockSpec(memory_space=pltpu.MemorySpace.VMEM)] * 6,
        out_specs=pl.BlockSpec(memory_space=pltpu.MemorySpace.VMEM),
        scratch_shapes=[
            pltpu.VMEM((T * B, 4 * H), jnp.float32),   # precomputed x-gates
            pltpu.VMEM((B * T, H), jnp.float32),       # batch-first hidden states
        ],
    )(x_tm, params["w_ih"], params["w_hh"], params["b"], w_out_p, b_out_p)

    return out_bf.reshape(B, T, Vpad)[:, :, :V]


def decoder_forward_ref(features, captions, params):
    """Pure-JAX reference (lax.scan LSTM) for correctness checking."""
    emb = params["embedding"]
    words = jnp.take(emb, captions[:, :-1], axis=0)
    x = jnp.concatenate([features[:, None, :], words], axis=1)
    B = x.shape[0]
    H = params["w_hh"].shape[0]

    def step(carry, x_t):
        h, c = carry
        gates = x_t @ params["w_ih"] + h @ params["w_hh"] + params["b"]
        i = jax.nn.sigmoid(gates[:, 0 * H:1 * H])
        f = jax.nn.sigmoid(gates[:, 1 * H:2 * H])
        g = jnp.tanh(gates[:, 2 * H:3 * H])
        o = jax.nn.sigmoid(gates[:, 3 * H:4 * H])
        c_new = f * c + i * g
        h_new = o * jnp.tanh(c_new)
        logits = h_new @ params["w_out"] + params["b_out"]
        return (h_new, c_new), logits

    h0 = jnp.zeros((B, H), jnp.float32)
    c0 = jnp.zeros((B, H), jnp.float32)
    _, out_tm = jax.lax.scan(step, (h0, c0), jnp.transpose(x, (1, 0, 2)))
    return jnp.transpose(out_tm, (1, 0, 2))


if __name__ == "__main__":
    embed_size, hidden_size, vocab_size = 32, 32, 64
    batch, cap_len = 2, 8          # captions length 8 -> LSTM sequence length T = 8

    key = jax.random.PRNGKey(0)
    k_params, k_feat, k_cap = jax.random.split(key, 3)

    params = make_params(k_params, embed_size, hidden_size, vocab_size)
    features = jax.random.normal(k_feat, (batch, embed_size), jnp.float32)
    captions = jax.random.randint(k_cap, (batch, cap_len), 0, vocab_size, jnp.int32)

    out = decoder_forward(features, captions, params)
    out = jax.block_until_ready(out)

    ref = decoder_forward_ref(features, captions, params)
    assert out.shape == (batch, cap_len, vocab_size), out.shape
    assert jnp.allclose(out, ref, atol=1e-4, rtol=1e-4), "mismatch vs JAX reference"

    print("KERNEL_OK")
</pallas_src>

<mosaic_0001>
module attributes {stable_mosaic.version = 11 : i64} {
  func.func @decoder_lstm_kernel(%arg0: memref<16x32xf32, #tpu.memory_space<vmem>>, %arg1: memref<32x128xf32, #tpu.memory_space<vmem>>, %arg2: memref<32x128xf32, #tpu.memory_space<vmem>>, %arg3: memref<1x128xf32, #tpu.memory_space<vmem>>, %arg4: memref<32x128xf32, #tpu.memory_space<vmem>>, %arg5: memref<1x128xf32, #tpu.memory_space<vmem>>, %arg6: memref<16x128xf32, #tpu.memory_space<vmem>>, %arg7: memref<16x128xf32, #tpu.memory_space<vmem>>, %arg8: memref<16x32xf32, #tpu.memory_space<vmem>>) attributes {dimension_semantics = [], scalar_prefetch = 0 : i64, scratch_operands = 2 : i64, tpu.core_type = #tpu.core_type<tc>} {
    %c0 = arith.constant 0 : index
    %c0_0 = arith.constant 0 : index
    %0 = vector.load %arg0[%c0, %c0_0] : memref<16x32xf32, #tpu.memory_space<vmem>>, vector<16x32xf32>
    %c0_1 = arith.constant 0 : index
    %c0_2 = arith.constant 0 : index
    %1 = vector.load %arg1[%c0_1, %c0_2] : memref<32x128xf32, #tpu.memory_space<vmem>>, vector<32x128xf32>
    %cst = arith.constant dense<0.000000e+00> : vector<16x128xf32>
    %2 = tpu.matmul %0, %1, %cst {dimension_numbers = #tpu.dot_dimension_numbers<[1], [0], [0], [1], [0, 0, 1, 1], [], []>} : vector<16x32xf32>, vector<32x128xf32>, vector<16x128xf32> -> vector<16x128xf32>
    %c0_3 = arith.constant 0 : index
    %c0_4 = arith.constant 0 : index
    %3 = vector.load %arg3[%c0_3, %c0_4] : memref<1x128xf32, #tpu.memory_space<vmem>>, vector<1x128xf32>
    %4 = vector.broadcast %3 : vector<1x128xf32> to vector<16x128xf32>
    %5 = arith.addf %2, %4 : vector<16x128xf32>
    %c0_5 = arith.constant 0 : index
    %c0_6 = arith.constant 0 : index
    %6 = vector.load %arg7[%c0_5, %c0_6] : memref<16x128xf32, #tpu.memory_space<vmem>>, vector<16x128xf32>
    tpu.vector_store %arg7[%c0_5, %c0_6], %5 {strides = array<i32>} : memref<16x128xf32, #tpu.memory_space<vmem>>, vector<16x128xf32>,
    %c0_7 = arith.constant 0 : index
    %c0_8 = arith.constant 0 : index
    %7 = vector.load %arg2[%c0_7, %c0_8] : memref<32x128xf32, #tpu.memory_space<vmem>>, vector<32x128xf32>
    %cst_9 = arith.constant 0.000000e+00 : f32
    %8 = vector.broadcast %cst_9 : f32 to vector<2x32xf32>
    %cst_10 = arith.constant 0.000000e+00 : f32
    %9 = vector.broadcast %cst_10 : f32 to vector<2x32xf32>
    %c0_i32 = arith.constant 0 : i32
    %c2_i32 = arith.constant 2 : i32
    %10 = arith.muli %c0_i32, %c2_i32 : i32
    %11 = tpu.assume_multiple %10, 2 : i32
    %12 = arith.index_cast %11 : i32 to index
    %c0_11 = arith.constant 0 : index
    %13 = vector.load %arg7[%12, %c0_11] : memref<16x128xf32, #tpu.memory_space<vmem>>, vector<2x128xf32>
    %cst_12 = arith.constant dense<0.000000e+00> : vector<2x128xf32>
    %14 = tpu.matmul %8, %7, %cst_12 {dimension_numbers = #tpu.dot_dimension_numbers<[1], [0], [0], [1], [0, 0, 1, 1], [], []>} : vector<2x32xf32>, vector<32x128xf32>, vector<2x128xf32> -> vector<2x128xf32>
    %15 = arith.addf %13, %14 : vector<2x128xf32>
    %16 = vector.extract_strided_slice %15 {offsets = [0, 0], sizes = [2, 32], strides = [1, 1]} : vector<2x128xf32> to vector<2x32xf32>
    %17 = arith.negf %16 : vector<2x32xf32>
    %18 = math.exp %17 : vector<2x32xf32>
    %cst_13 = arith.constant 1.000000e+00 : f32
    %19 = vector.broadcast %cst_13 : f32 to vector<2x32xf32>
    %20 = arith.addf %19, %18 : vector<2x32xf32>
    %21 = arith.divf %19, %20 : vector<2x32xf32>
    %22 = vector.extract_strided_slice %15 {offsets = [0, 32], sizes = [2, 32], strides = [1, 1]} : vector<2x128xf32> to vector<2x32xf32>
    %23 = arith.negf %22 : vector<2x32xf32>
    %24 = math.exp %23 : vector<2x32xf32>
    %cst_14 = arith.constant 1.000000e+00 : f32
    %25 = vector.broadcast %cst_14 : f32 to vector<2x32xf32>
    %26 = arith.addf %25, %24 : vector<2x32xf32>
    %27 = arith.divf %25, %26 : vector<2x32xf32>
    %28 = vector.extract_strided_slice %15 {offsets = [0, 64], sizes = [2, 32], strides = [1, 1]} : vector<2x128xf32> to vector<2x32xf32>
    %29 = math.tanh %28 : vector<2x32xf32>
    %30 = vector.extract_strided_slice %15 {offsets = [0, 96], sizes = [2, 32], strides = [1, 1]} : vector<2x128xf32> to vector<2x32xf32>
    %31 = arith.negf %30 : vector<2x32xf32>
    %32 = math.exp %31 : vector<2x32xf32>
    %cst_15 = arith.constant 1.000000e+00 : f32
    %33 = vector.broadcast %cst_15 : f32 to vector<2x32xf32>
    %34 = arith.addf %33, %32 : vector<2x32xf32>
    %35 = arith.divf %33, %34 : vector<2x32xf32>
    %36 = arith.mulf %27, %9 : vector<2x32xf32>
    %37 = arith.mulf %21, %29 : vector<2x32xf32>
    %38 = arith.addf %36, %37 : vector<2x32xf32>
    %39 = math.tanh %38 : vector<2x32xf32>
    %40 = arith.mulf %35, %39 : vector<2x32xf32>
    %41 = vector.extract_strided_slice %40 {offsets = [0, 0], sizes = [1, 32], strides = [1, 1]} : vector<2x32xf32> to vector<1x32xf32>
    %c0_i32_16 = arith.constant 0 : i32
    %42 = arith.addi %c0_i32_16, %c0_i32 : i32
    %43 = arith.index_cast %42 : i32 to index
    %c0_17 = arith.constant 0 : index
    %44 = vector.load %arg8[%43, %c0_17] : memref<16x32xf32, #tpu.memory_space<vmem>>, vector<1x32xf32>
    tpu.vector_store %arg8[%43, %c0_17], %41 {strides = array<i32>} : memref<16x32xf32, #tpu.memory_space<vmem>>, vector<1x32xf32>,
    %45 = vector.extract_strided_slice %40 {offsets = [1, 0], sizes = [1, 32], strides = [1, 1]} : vector<2x32xf32> to vector<1x32xf32>
    %c8_i32 = arith.constant 8 : i32
    %46 = arith.addi %c8_i32, %c0_i32 : i32
    %47 = arith.index_cast %46 : i32 to index
    %c0_18 = arith.constant 0 : index
    %48 = vector.load %arg8[%47, %c0_18] : memref<16x32xf32, #tpu.memory_space<vmem>>, vector<1x32xf32>
    tpu.vector_store %arg8[%47, %c0_18], %45 {strides = array<i32>} : memref<16x32xf32, #tpu.memory_space<vmem>>, vector<1x32xf32>,
    %c1_i32 = arith.constant 1 : i32
    %c2_i32_19 = arith.constant 2 : i32
    %49 = arith.muli %c1_i32, %c2_i32_19 : i32
    %50 = tpu.assume_multiple %49, 2 : i32
    %51 = arith.index_cast %50 : i32 to index
    %c0_20 = arith.constant 0 : index
    %52 = vector.load %arg7[%51, %c0_20] : memref<16x128xf32, #tpu.memory_space<vmem>>, vector<2x128xf32>
    %cst_21 = arith.constant dense<0.000000e+00> : vector<2x128xf32>
    %53 = tpu.matmul %40, %7, %cst_21 {dimension_numbers = #tpu.dot_dimension_numbers<[1], [0], [0], [1], [0, 0, 1, 1], [], []>} : vector<2x32xf32>, vector<32x128xf32>, vector<2x128xf32> -> vector<2x128xf32>
    %54 = arith.addf %52, %53 : vector<2x128xf32>
    %55 = vector.extract_strided_slice %54 {offsets = [0, 0], sizes = [2, 32], strides = [1, 1]} : vector<2x128xf32> to vector<2x32xf32>
    %56 = arith.negf %55 : vector<2x32xf32>
    %57 = math.exp %56 : vector<2x32xf32>
    %cst_22 = arith.constant 1.000000e+00 : f32
    %58 = vector.broadcast %cst_22 : f32 to vector<2x32xf32>
    %59 = arith.addf %58, %57 : vector<2x32xf32>
    %60 = arith.divf %58, %59 : vector<2x32xf32>
    %61 = vector.extract_strided_slice %54 {offsets = [0, 32], sizes = [2, 32], strides = [1, 1]} : vector<2x128xf32> to vector<2x32xf32>
    %62 = arith.negf %61 : vector<2x32xf32>
    %63 = math.exp %62 : vector<2x32xf32>
    %cst_23 = arith.constant 1.000000e+00 : f32
    %64 = vector.broadcast %cst_23 : f32 to vector<2x32xf32>
    %65 = arith.addf %64, %63 : vector<2x32xf32>
    %66 = arith.divf %64, %65 : vector<2x32xf32>
    %67 = vector.extract_strided_slice %54 {offsets = [0, 64], sizes = [2, 32], strides = [1, 1]} : vector<2x128xf32> to vector<2x32xf32>
    %68 = math.tanh %67 : vector<2x32xf32>
    %69 = vector.extract_strided_slice %54 {offsets = [0, 96], sizes = [2, 32], strides = [1, 1]} : vector<2x128xf32> to vector<2x32xf32>
    %70 = arith.negf %69 : vector<2x32xf32>
    %71 = math.exp %70 : vector<2x32xf32>
    %cst_24 = arith.constant 1.000000e+00 : f32
    %72 = vector.broadcast %cst_24 : f32 to vector<2x32xf32>
    %73 = arith.addf %72, %71 : vector<2x32xf32>
    %74 = arith.divf %72, %73 : vector<2x32xf32>
    %75 = arith.mulf %66, %38 : vector<2x32xf32>
    %76 = arith.mulf %60, %68 : vector<2x32xf32>
    %77 = arith.addf %75, %76 : vector<2x32xf32>
    %78 = math.tanh %77 : vector<2x32xf32>
    %79 = arith.mulf %74, %78 : vector<2x32xf32>
    %80 = vector.extract_strided_slice %79 {offsets = [0, 0], sizes = [1, 32], strides = [1, 1]} : vector<2x32xf32> to vector<1x32xf32>
    %c0_i32_25 = arith.constant 0 : i32
    %81 = arith.addi %c0_i32_25, %c1_i32 : i32
    %82 = arith.index_cast %81 : i32 to index
    %c0_26 = arith.constant 0 : index
    %83 = vector.load %arg8[%82, %c0_26] : memref<16x32xf32, #tpu.memory_space<vmem>>, vector<1x32xf32>
    tpu.vector_store %arg8[%82, %c0_26], %80 {strides = array<i32>} : memref<16x32xf32, #tpu.memory_space<vmem>>, vector<1x32xf32>,
    %84 = vector.extract_strided_slice %79 {offsets = [1, 0], sizes = [1, 32], strides = [1, 1]} : vector<2x32xf32> to vector<1x32xf32>
    %c8_i32_27 = arith.constant 8 : i32
    %85 = arith.addi %c8_i32_27, %c1_i32 : i32
    %86 = arith.index_cast %85 : i32 to index
    %c0_28 = arith.constant 0 : index
    %87 = vector.load %arg8[%86, %c0_28] : memref<16x32xf32, #tpu.memory_space<vmem>>, vector<1x32xf32>
    tpu.vector_store %arg8[%86, %c0_28], %84 {strides = array<i32>} : memref<16x32xf32, #tpu.memory_space<vmem>>, vector<1x32xf32>,
    %c2_i32_29 = arith.constant 2 : i32
    %c2_i32_30 = arith.constant 2 : i32
    %88 = arith.muli %c2_i32_29, %c2_i32_30 : i32
    %89 = tpu.assume_multiple %88, 2 : i32
    %90 = arith.index_cast %89 : i32 to index
    %c0_31 = arith.constant 0 : index
    %91 = vector.load %arg7[%90, %c0_31] : memref<16x128xf32, #tpu.memory_space<vmem>>, vector<2x128xf32>
    %cst_32 = arith.constant dense<0.000000e+00> : vector<2x128xf32>
    %92 = tpu.matmul %79, %7, %cst_32 {dimension_numbers = #tpu.dot_dimension_numbers<[1], [0], [0], [1], [0, 0, 1, 1], [], []>} : vector<2x32xf32>, vector<32x128xf32>, vector<2x128xf32> -> vector<2x128xf32>
    %93 = arith.addf %91, %92 : vector<2x128xf32>
    %94 = vector.extract_strided_slice %93 {offsets = [0, 0], sizes = [2, 32], strides = [1, 1]} : vector<2x128xf32> to vector<2x32xf32>
    %95 = arith.negf %94 : vector<2x32xf32>
    %96 = math.exp %95 : vector<2x32xf32>
    %cst_33 = arith.constant 1.000000e+00 : f32
    %97 = vector.broadcast %cst_33 : f32 to vector<2x32xf32>
    %98 = arith.addf %97, %96 : vector<2x32xf32>
    %99 = arith.divf %97, %98 : vector<2x32xf32>
    %100 = vector.extract_strided_slice %93 {offsets = [0, 32], sizes = [2, 32], strides = [1, 1]} : vector<2x128xf32> to vector<2x32xf32>
    %101 = arith.negf %100 : vector<2x32xf32>
    %102 = math.exp %101 : vector<2x32xf32>
    %cst_34 = arith.constant 1.000000e+00 : f32
    %103 = vector.broadcast %cst_34 : f32 to vector<2x32xf32>
    %104 = arith.addf %103, %102 : vector<2x32xf32>
    %105 = arith.divf %103, %104 : vector<2x32xf32>
    %106 = vector.extract_strided_slice %93 {offsets = [0, 64], sizes = [2, 32], strides = [1, 1]} : vector<2x128xf32> to vector<2x32xf32>
    %107 = math.tanh %106 : vector<2x32xf32>
    %108 = vector.extract_strided_slice %93 {offsets = [0, 96], sizes = [2, 32], strides = [1, 1]} : vector<2x128xf32> to vector<2x32xf32>
    %109 = arith.negf %108 : vector<2x32xf32>
    %110 = math.exp %109 : vector<2x32xf32>
    %cst_35 = arith.constant 1.000000e+00 : f32
    %111 = vector.broadcast %cst_35 : f32 to vector<2x32xf32>
    %112 = arith.addf %111, %110 : vector<2x32xf32>
    %113 = arith.divf %111, %112 : vector<2x32xf32>
    %114 = arith.mulf %105, %77 : vector<2x32xf32>
    %115 = arith.mulf %99, %107 : vector<2x32xf32>
    %116 = arith.addf %114, %115 : vector<2x32xf32>
    %117 = math.tanh %116 : vector<2x32xf32>
    %118 = arith.mulf %113, %117 : vector<2x32xf32>
    %119 = vector.extract_strided_slice %118 {offsets = [0, 0], sizes = [1, 32], strides = [1, 1]} : vector<2x32xf32> to vector<1x32xf32>
    %c0_i32_36 = arith.constant 0 : i32
    %120 = arith.addi %c0_i32_36, %c2_i32_29 : i32
    %121 = arith.index_cast %120 : i32 to index
    %c0_37 = arith.constant 0 : index
    %122 = vector.load %arg8[%121, %c0_37] : memref<16x32xf32, #tpu.memory_space<vmem>>, vector<1x32xf32>
    tpu.vector_store %arg8[%121, %c0_37], %119 {strides = array<i32>} : memref<16x32xf32, #tpu.memory_space<vmem>>, vector<1x32xf32>,
    %123 = vector.extract_strided_slice %118 {offsets = [1, 0], sizes = [1, 32], strides = [1, 1]} : vector<2x32xf32> to vector<1x32xf32>
    %c8_i32_38 = arith.constant 8 : i32
    %124 = arith.addi %c8_i32_38, %c2_i32_29 : i32
    %125 = arith.index_cast %124 : i32 to index
    %c0_39 = arith.constant 0 : index
    %126 = vector.load %arg8[%125, %c0_39] : memref<16x32xf32, #tpu.memory_space<vmem>>, vector<1x32xf32>
    tpu.vector_store %arg8[%125, %c0_39], %123 {strides = array<i32>} : memref<16x32xf32, #tpu.memory_space<vmem>>, vector<1x32xf32>,
    %c3_i32 = arith.constant 3 : i32
    %c2_i32_40 = arith.constant 2 : i32
    %127 = arith.muli %c3_i32, %c2_i32_40 : i32
    %128 = tpu.assume_multiple %127, 2 : i32
    %129 = arith.index_cast %128 : i32 to index
    %c0_41 = arith.constant 0 : index
    %130 = vector.load %arg7[%129, %c0_41] : memref<16x128xf32, #tpu.memory_space<vmem>>, vector<2x128xf32>
    %cst_42 = arith.constant dense<0.000000e+00> : vector<2x128xf32>
    %131 = tpu.matmul %118, %7, %cst_42 {dimension_numbers = #tpu.dot_dimension_numbers<[1], [0], [0], [1], [0, 0, 1, 1], [], []>} : vector<2x32xf32>, vector<32x128xf32>, vector<2x128xf32> -> vector<2x128xf32>
    %132 = arith.addf %130, %131 : vector<2x128xf32>
    %133 = vector.extract_strided_slice %132 {offsets = [0, 0], sizes = [2, 32], strides = [1, 1]} : vector<2x128xf32> to vector<2x32xf32>
    %134 = arith.negf %133 : vector<2x32xf32>
    %135 = math.exp %134 : vector<2x32xf32>
    %cst_43 = arith.constant 1.000000e+00 : f32
    %136 = vector.broadcast %cst_43 : f32 to vector<2x32xf32>
    %137 = arith.addf %136, %135 : vector<2x32xf32>
    %138 = arith.divf %136, %137 : vector<2x32xf32>
    %139 = vector.extract_strided_slice %132 {offsets = [0, 32], sizes = [2, 32], strides = [1, 1]} : vector<2x128xf32> to vector<2x32xf32>
    %140 = arith.negf %139 : vector<2x32xf32>
    %141 = math.exp %140 : vector<2x32xf32>
    %cst_44 = arith.constant 1.000000e+00 : f32
    %142 = vector.broadcast %cst_44 : f32 to vector<2x32xf32>
    %143 = arith.addf %142, %141 : vector<2x32xf32>
    %144 = arith.divf %142, %143 : vector<2x32xf32>
    %145 = vector.extract_strided_slice %132 {offsets = [0, 64], sizes = [2, 32], strides = [1, 1]} : vector<2x128xf32> to vector<2x32xf32>
    %146 = math.tanh %145 : vector<2x32xf32>
    %147 = vector.extract_strided_slice %132 {offsets = [0, 96], sizes = [2, 32], strides = [1, 1]} : vector<2x128xf32> to vector<2x32xf32>
    %148 = arith.negf %147 : vector<2x32xf32>
    %149 = math.exp %148 : vector<2x32xf32>
    %cst_45 = arith.constant 1.000000e+00 : f32
    %150 = vector.broadcast %cst_45 : f32 to vector<2x32xf32>
    %151 = arith.addf %150, %149 : vector<2x32xf32>
    %152 = arith.divf %150, %151 : vector<2x32xf32>
    %153 = arith.mulf %144, %116 : vector<2x32xf32>
    %154 = arith.mulf %138, %146 : vector<2x32xf32>
    %155 = arith.addf %153, %154 : vector<2x32xf32>
    %156 = math.tanh %155 : vector<2x32xf32>
    %157 = arith.mulf %152, %156 : vector<2x32xf32>
    %158 = vector.extract_strided_slice %157 {offsets = [0, 0], sizes = [1, 32], strides = [1, 1]} : vector<2x32xf32> to vector<1x32xf32>
    %c0_i32_46 = arith.constant 0 : i32
    %159 = arith.addi %c0_i32_46, %c3_i32 : i32
    %160 = arith.index_cast %159 : i32 to index
    %c0_47 = arith.constant 0 : index
    %161 = vector.load %arg8[%160, %c0_47] : memref<16x32xf32, #tpu.memory_space<vmem>>, vector<1x32xf32>
    tpu.vector_store %arg8[%160, %c0_47], %158 {strides = array<i32>} : memref<16x32xf32, #tpu.memory_space<vmem>>, vector<1x32xf32>,
    %162 = vector.extract_strided_slice %157 {offsets = [1, 0], sizes = [1, 32], strides = [1, 1]} : vector<2x32xf32> to vector<1x32xf32>
    %c8_i32_48 = arith.constant 8 : i32
    %163 = arith.addi %c8_i32_48, %c3_i32 : i32
    %164 = arith.index_cast %163 : i32 to index
    %c0_49 = arith.constant 0 : index
    %165 = vector.load %arg8[%164, %c0_49] : memref<16x32xf32, #tpu.memory_space<vmem>>, vector<1x32xf32>
    tpu.vector_store %arg8[%164, %c0_49], %162 {strides = array<i32>} : memref<16x32xf32, #tpu.memory_space<vmem>>, vector<1x32xf32>,
    %c4_i32 = arith.constant 4 : i32
    %c2_i32_50 = arith.constant 2 : i32
    %166 = arith.muli %c4_i32, %c2_i32_50 : i32
    %167 = tpu.assume_multiple %166, 2 : i32
    %168 = arith.index_cast %167 : i32 to index
    %c0_51 = arith.constant 0 : index
    %169 = vector.load %arg7[%168, %c0_51] : memref<16x128xf32, #tpu.memory_space<vmem>>, vector<2x128xf32>
    %cst_52 = arith.constant dense<0.000000e+00> : vector<2x128xf32>
    %170 = tpu.matmul %157, %7, %cst_52 {dimension_numbers = #tpu.dot_dimension_numbers<[1], [0], [0], [1], [0, 0, 1, 1], [], []>} : vector<2x32xf32>, vector<32x128xf32>, vector<2x128xf32> -> vector<2x128xf32>
    %171 = arith.addf %169, %170 : vector<2x128xf32>
    %172 = vector.extract_strided_slice %171 {offsets = [0, 0], sizes = [2, 32], strides = [1, 1]} : vector<2x128xf32> to vector<2x32xf32>
    %173 = arith.negf %172 : vector<2x32xf32>
    %174 = math.exp %173 : vector<2x32xf32>
    %cst_53 = arith.constant 1.000000e+00 : f32
    %175 = vector.broadcast %cst_53 : f32 to vector<2x32xf32>
    %176 = arith.addf %175, %174 : vector<2x32xf32>
    %177 = arith.divf %175, %176 : vector<2x32xf32>
    %178 = vector.extract_strided_slice %171 {offsets = [0, 32], sizes = [2, 32], strides = [1, 1]} : vector<2x128xf32> to vector<2x32xf32>
    %179 = arith.negf %178 : vector<2x32xf32>
    %180 = math.exp %179 : vector<2x32xf32>
    %cst_54 = arith.constant 1.000000e+00 : f32
    %181 = vector.broadcast %cst_54 : f32 to vector<2x32xf32>
    %182 = arith.addf %181, %180 : vector<2x32xf32>
    %183 = arith.divf %181, %182 : vector<2x32xf32>
    %184 = vector.extract_strided_slice %171 {offsets = [0, 64], sizes = [2, 32], strides = [1, 1]} : vector<2x128xf32> to vector<2x32xf32>
    %185 = math.tanh %184 : vector<2x32xf32>
    %186 = vector.extract_strided_slice %171 {offsets = [0, 96], sizes = [2, 32], strides = [1, 1]} : vector<2x128xf32> to vector<2x32xf32>
    %187 = arith.negf %186 : vector<2x32xf32>
    %188 = math.exp %187 : vector<2x32xf32>
    %cst_55 = arith.constant 1.000000e+00 : f32
    %189 = vector.broadcast %cst_55 : f32 to vector<2x32xf32>
    %190 = arith.addf %189, %188 : vector<2x32xf32>
    %191 = arith.divf %189, %190 : vector<2x32xf32>
    %192 = arith.mulf %183, %155 : vector<2x32xf32>
    %193 = arith.mulf %177, %185 : vector<2x32xf32>
    %194 = arith.addf %192, %193 : vector<2x32xf32>
    %195 = math.tanh %194 : vector<2x32xf32>
    %196 = arith.mulf %191, %195 : vector<2x32xf32>
    %197 = vector.extract_strided_slice %196 {offsets = [0, 0], sizes = [1, 32], strides = [1, 1]} : vector<2x32xf32> to vector<1x32xf32>
    %c0_i32_56 = arith.constant 0 : i32
    %198 = arith.addi %c0_i32_56, %c4_i32 : i32
    %199 = arith.index_cast %198 : i32 to index
    %c0_57 = arith.constant 0 : index
    %200 = vector.load %arg8[%199, %c0_57] : memref<16x32xf32, #tpu.memory_space<vmem>>, vector<1x32xf32>
    tpu.vector_store %arg8[%199, %c0_57], %197 {strides = array<i32>} : memref<16x32xf32, #tpu.memory_space<vmem>>, vector<1x32xf32>,
    %201 = vector.extract_strided_slice %196 {offsets = [1, 0], sizes = [1, 32], strides = [1, 1]} : vector<2x32xf32> to vector<1x32xf32>
    %c8_i32_58 = arith.constant 8 : i32
    %202 = arith.addi %c8_i32_58, %c4_i32 : i32
    %203 = arith.index_cast %202 : i32 to index
    %c0_59 = arith.constant 0 : index
    %204 = vector.load %arg8[%203, %c0_59] : memref<16x32xf32, #tpu.memory_space<vmem>>, vector<1x32xf32>
    tpu.vector_store %arg8[%203, %c0_59], %201 {strides = array<i32>} : memref<16x32xf32, #tpu.memory_space<vmem>>, vector<1x32xf32>,
    %c5_i32 = arith.constant 5 : i32
    %c2_i32_60 = arith.constant 2 : i32
    %205 = arith.muli %c5_i32, %c2_i32_60 : i32
    %206 = tpu.assume_multiple %205, 2 : i32
    %207 = arith.index_cast %206 : i32 to index
    %c0_61 = arith.constant 0 : index
    %208 = vector.load %arg7[%207, %c0_61] : memref<16x128xf32, #tpu.memory_space<vmem>>, vector<2x128xf32>
    %cst_62 = arith.constant dense<0.000000e+00> : vector<2x128xf32>
    %209 = tpu.matmul %196, %7, %cst_62 {dimension_numbers = #tpu.dot_dimension_numbers<[1], [0], [0], [1], [0, 0, 1, 1], [], []>} : vector<2x32xf32>, vector<32x128xf32>, vector<2x128xf32> -> vector<2x128xf32>
    %210 = arith.addf %208, %209 : vector<2x128xf32>
    %211 = vector.extract_strided_slice %210 {offsets = [0, 0], sizes = [2, 32], strides = [1, 1]} : vector<2x128xf32> to vector<2x32xf32>
    %212 = arith.negf %211 : vector<2x32xf32>
    %213 = math.exp %212 : vector<2x32xf32>
    %cst_63 = arith.constant 1.000000e+00 : f32
    %214 = vector.broadcast %cst_63 : f32 to vector<2x32xf32>
    %215 = arith.addf %214, %213 : vector<2x32xf32>
    %216 = arith.divf %214, %215 : vector<2x32xf32>
    %217 = vector.extract_strided_slice %210 {offsets = [0, 32], sizes = [2, 32], strides = [1, 1]} : vector<2x128xf32> to vector<2x32xf32>
    %218 = arith.negf %217 : vector<2x32xf32>
    %219 = math.exp %218 : vector<2x32xf32>
    %cst_64 = arith.constant 1.000000e+00 : f32
    %220 = vector.broadcast %cst_64 : f32 to vector<2x32xf32>
    %221 = arith.addf %220, %219 : vector<2x32xf32>
    %222 = arith.divf %220, %221 : vector<2x32xf32>
    %223 = vector.extract_strided_slice %210 {offsets = [0, 64], sizes = [2, 32], strides = [1, 1]} : vector<2x128xf32> to vector<2x32xf32>
    %224 = math.tanh %223 : vector<2x32xf32>
    %225 = vector.extract_strided_slice %210 {offsets = [0, 96], sizes = [2, 32], strides = [1, 1]} : vector<2x128xf32> to vector<2x32xf32>
    %226 = arith.negf %225 : vector<2x32xf32>
    %227 = math.exp %226 : vector<2x32xf32>
    %cst_65 = arith.constant 1.000000e+00 : f32
    %228 = vector.broadcast %cst_65 : f32 to vector<2x32xf32>
    %229 = arith.addf %228, %227 : vector<2x32xf32>
    %230 = arith.divf %228, %229 : vector<2x32xf32>
    %231 = arith.mulf %222, %194 : vector<2x32xf32>
    %232 = arith.mulf %216, %224 : vector<2x32xf32>
    %233 = arith.addf %231, %232 : vector<2x32xf32>
    %234 = math.tanh %233 : vector<2x32xf32>
    %235 = arith.mulf %230, %234 : vector<2x32xf32>
    %236 = vector.extract_strided_slice %235 {offsets = [0, 0], sizes = [1, 32], strides = [1, 1]} : vector<2x32xf32> to vector<1x32xf32>
    %c0_i32_66 = arith.constant 0 : i32
    %237 = arith.addi %c0_i32_66, %c5_i32 : i32
    %238 = arith.index_cast %237 : i32 to index
    %c0_67 = arith.constant 0 : index
    %239 = vector.load %arg8[%238, %c0_67] : memref<16x32xf32, #tpu.memory_space<vmem>>, vector<1x32xf32>
    tpu.vector_store %arg8[%238, %c0_67], %236 {strides = array<i32>} : memref<16x32xf32, #tpu.memory_space<vmem>>, vector<1x32xf32>,
    %240 = vector.extract_strided_slice %235 {offsets = [1, 0], sizes = [1, 32], strides = [1, 1]} : vector<2x32xf32> to vector<1x32xf32>
    %c8_i32_68 = arith.constant 8 : i32
    %241 = arith.addi %c8_i32_68, %c5_i32 : i32
    %242 = arith.index_cast %241 : i32 to index
    %c0_69 = arith.constant 0 : index
    %243 = vector.load %arg8[%242, %c0_69] : memref<16x32xf32, #tpu.memory_space<vmem>>, vector<1x32xf32>
    tpu.vector_store %arg8[%242, %c0_69], %240 {strides = array<i32>} : memref<16x32xf32, #tpu.memory_space<vmem>>, vector<1x32xf32>,
    %c6_i32 = arith.constant 6 : i32
    %c2_i32_70 = arith.constant 2 : i32
    %244 = arith.muli %c6_i32, %c2_i32_70 : i32
    %245 = tpu.assume_multiple %244, 2 : i32
    %246 = arith.index_cast %245 : i32 to index
    %c0_71 = arith.constant 0 : index
    %247 = vector.load %arg7[%246, %c0_71] : memref<16x128xf32, #tpu.memory_space<vmem>>, vector<2x128xf32>
    %cst_72 = arith.constant dense<0.000000e+00> : vector<2x128xf32>
    %248 = tpu.matmul %235, %7, %cst_72 {dimension_numbers = #tpu.dot_dimension_numbers<[1], [0], [0], [1], [0, 0, 1, 1], [], []>} : vector<2x32xf32>, vector<32x128xf32>, vector<2x128xf32> -> vector<2x128xf32>
    %249 = arith.addf %247, %248 : vector<2x128xf32>
    %250 = vector.extract_strided_slice %249 {offsets = [0, 0], sizes = [2, 32], strides = [1, 1]} : vector<2x128xf32> to vector<2x32xf32>
    %251 = arith.negf %250 : vector<2x32xf32>
    %252 = math.exp %251 : vector<2x32xf32>
    %cst_73 = arith.constant 1.000000e+00 : f32
    %253 = vector.broadcast %cst_73 : f32 to vector<2x32xf32>
    %254 = arith.addf %253, %252 : vector<2x32xf32>
    %255 = arith.divf %253, %254 : vector<2x32xf32>
    %256 = vector.extract_strided_slice %249 {offsets = [0, 32], sizes = [2, 32], strides = [1, 1]} : vector<2x128xf32> to vector<2x32xf32>
    %257 = arith.negf %256 : vector<2x32xf32>
    %258 = math.exp %257 : vector<2x32xf32>
    %cst_74 = arith.constant 1.000000e+00 : f32
    %259 = vector.broadcast %cst_74 : f32 to vector<2x32xf32>
    %260 = arith.addf %259, %258 : vector<2x32xf32>
    %261 = arith.divf %259, %260 : vector<2x32xf32>
    %262 = vector.extract_strided_slice %249 {offsets = [0, 64], sizes = [2, 32], strides = [1, 1]} : vector<2x128xf32> to vector<2x32xf32>
    %263 = math.tanh %262 : vector<2x32xf32>
    %264 = vector.extract_strided_slice %249 {offsets = [0, 96], sizes = [2, 32], strides = [1, 1]} : vector<2x128xf32> to vector<2x32xf32>
    %265 = arith.negf %264 : vector<2x32xf32>
    %266 = math.exp %265 : vector<2x32xf32>
    %cst_75 = arith.constant 1.000000e+00 : f32
    %267 = vector.broadcast %cst_75 : f32 to vector<2x32xf32>
    %268 = arith.addf %267, %266 : vector<2x32xf32>
    %269 = arith.divf %267, %268 : vector<2x32xf32>
    %270 = arith.mulf %261, %233 : vector<2x32xf32>
    %271 = arith.mulf %255, %263 : vector<2x32xf32>
    %272 = arith.addf %270, %271 : vector<2x32xf32>
    %273 = math.tanh %272 : vector<2x32xf32>
    %274 = arith.mulf %269, %273 : vector<2x32xf32>
    %275 = vector.extract_strided_slice %274 {offsets = [0, 0], sizes = [1, 32], strides = [1, 1]} : vector<2x32xf32> to vector<1x32xf32>
    %c0_i32_76 = arith.constant 0 : i32
    %276 = arith.addi %c0_i32_76, %c6_i32 : i32
    %277 = arith.index_cast %276 : i32 to index
    %c0_77 = arith.constant 0 : index
    %278 = vector.load %arg8[%277, %c0_77] : memref<16x32xf32, #tpu.memory_space<vmem>>, vector<1x32xf32>
    tpu.vector_store %arg8[%277, %c0_77], %275 {strides = array<i32>} : memref<16x32xf32, #tpu.memory_space<vmem>>, vector<1x32xf32>,
    %279 = vector.extract_strided_slice %274 {offsets = [1, 0], sizes = [1, 32], strides = [1, 1]} : vector<2x32xf32> to vector<1x32xf32>
    %c8_i32_78 = arith.constant 8 : i32
    %280 = arith.addi %c8_i32_78, %c6_i32 : i32
    %281 = arith.index_cast %280 : i32 to index
    %c0_79 = arith.constant 0 : index
    %282 = vector.load %arg8[%281, %c0_79] : memref<16x32xf32, #tpu.memory_space<vmem>>, vector<1x32xf32>
    tpu.vector_store %arg8[%281, %c0_79], %279 {strides = array<i32>} : memref<16x32xf32, #tpu.memory_space<vmem>>, vector<1x32xf32>,
    %c7_i32 = arith.constant 7 : i32
    %c2_i32_80 = arith.constant 2 : i32
    %283 = arith.muli %c7_i32, %c2_i32_80 : i32
    %284 = tpu.assume_multiple %283, 2 : i32
    %285 = arith.index_cast %284 : i32 to index
    %c0_81 = arith.constant 0 : index
    %286 = vector.load %arg7[%285, %c0_81] : memref<16x128xf32, #tpu.memory_space<vmem>>, vector<2x128xf32>
    %cst_82 = arith.constant dense<0.000000e+00> : vector<2x128xf32>
    %287 = tpu.matmul %274, %7, %cst_82 {dimension_numbers = #tpu.dot_dimension_numbers<[1], [0], [0], [1], [0, 0, 1, 1], [], []>} : vector<2x32xf32>, vector<32x128xf32>, vector<2x128xf32> -> vector<2x128xf32>
    %288 = arith.addf %286, %287 : vector<2x128xf32>
    %289 = vector.extract_strided_slice %288 {offsets = [0, 0], sizes = [2, 32], strides = [1, 1]} : vector<2x128xf32> to vector<2x32xf32>
    %290 = arith.negf %289 : vector<2x32xf32>
    %291 = math.exp %290 : vector<2x32xf32>
    %cst_83 = arith.constant 1.000000e+00 : f32
    %292 = vector.broadcast %cst_83 : f32 to vector<2x32xf32>
    %293 = arith.addf %292, %291 : vector<2x32xf32>
    %294 = arith.divf %292, %293 : vector<2x32xf32>
    %295 = vector.extract_strided_slice %288 {offsets = [0, 32], sizes = [2, 32], strides = [1, 1]} : vector<2x128xf32> to vector<2x32xf32>
    %296 = arith.negf %295 : vector<2x32xf32>
    %297 = math.exp %296 : vector<2x32xf32>
    %cst_84 = arith.constant 1.000000e+00 : f32
    %298 = vector.broadcast %cst_84 : f32 to vector<2x32xf32>
    %299 = arith.addf %298, %297 : vector<2x32xf32>
    %300 = arith.divf %298, %299 : vector<2x32xf32>
    %301 = vector.extract_strided_slice %288 {offsets = [0, 64], sizes = [2, 32], strides = [1, 1]} : vector<2x128xf32> to vector<2x32xf32>
    %302 = math.tanh %301 : vector<2x32xf32>
    %303 = vector.extract_strided_slice %288 {offsets = [0, 96], sizes = [2, 32], strides = [1, 1]} : vector<2x128xf32> to vector<2x32xf32>
    %304 = arith.negf %303 : vector<2x32xf32>
    %305 = math.exp %304 : vector<2x32xf32>
    %cst_85 = arith.constant 1.000000e+00 : f32
    %306 = vector.broadcast %cst_85 : f32 to vector<2x32xf32>
    %307 = arith.addf %306, %305 : vector<2x32xf32>
    %308 = arith.divf %306, %307 : vector<2x32xf32>
    %309 = arith.mulf %300, %272 : vector<2x32xf32>
    %310 = arith.mulf %294, %302 : vector<2x32xf32>
    %311 = arith.addf %309, %310 : vector<2x32xf32>
    %312 = math.tanh %311 : vector<2x32xf32>
    %313 = arith.mulf %308, %312 : vector<2x32xf32>
    %314 = vector.extract_strided_slice %313 {offsets = [0, 0], sizes = [1, 32], strides = [1, 1]} : vector<2x32xf32> to vector<1x32xf32>
    %c0_i32_86 = arith.constant 0 : i32
    %315 = arith.addi %c0_i32_86, %c7_i32 : i32
    %316 = arith.index_cast %315 : i32 to index
    %c0_87 = arith.constant 0 : index
    %317 = vector.load %arg8[%316, %c0_87] : memref<16x32xf32, #tpu.memory_space<vmem>>, vector<1x32xf32>
    tpu.vector_store %arg8[%316, %c0_87], %314 {strides = array<i32>} : memref<16x32xf32, #tpu.memory_space<vmem>>, vector<1x32xf32>,
    %318 = vector.extract_strided_slice %313 {offsets = [1, 0], sizes = [1, 32], strides = [1, 1]} : vector<2x32xf32> to vector<1x32xf32>
    %c8_i32_88 = arith.constant 8 : i32
    %319 = arith.addi %c8_i32_88, %c7_i32 : i32
    %320 = arith.index_cast %319 : i32 to index
    %c0_89 = arith.constant 0 : index
    %321 = vector.load %arg8[%320, %c0_89] : memref<16x32xf32, #tpu.memory_space<vmem>>, vector<1x32xf32>
    tpu.vector_store %arg8[%320, %c0_89], %318 {strides = array<i32>} : memref<16x32xf32, #tpu.memory_space<vmem>>, vector<1x32xf32>,
    %c8_i32_90 = arith.constant 8 : i32
    %c0_91 = arith.constant 0 : index
    %c0_92 = arith.constant 0 : index
    %322 = vector.load %arg8[%c0_91, %c0_92] : memref<16x32xf32, #tpu.memory_space<vmem>>, vector<16x32xf32>
    %c0_93 = arith.constant 0 : index
    %c0_94 = arith.constant 0 : index
    %323 = vector.load %arg4[%c0_93, %c0_94] : memref<32x128xf32, #tpu.memory_space<vmem>>, vector<32x128xf32>
    %cst_95 = arith.constant dense<0.000000e+00> : vector<16x128xf32>
    %324 = tpu.matmul %322, %323, %cst_95 {dimension_numbers = #tpu.dot_dimension_numbers<[1], [0], [0], [1], [0, 0, 1, 1], [], []>} : vector<16x32xf32>, vector<32x128xf32>, vector<16x128xf32> -> vector<16x128xf32>
    %c0_96 = arith.constant 0 : index
    %c0_97 = arith.constant 0 : index
    %325 = vector.load %arg5[%c0_96, %c0_97] : memref<1x128xf32, #tpu.memory_space<vmem>>, vector<1x128xf32>
    %326 = vector.broadcast %325 : vector<1x128xf32> to vector<16x128xf32>
    %327 = arith.addf %324, %326 : vector<16x128xf32>
    %c0_98 = arith.constant 0 : index
    %c0_99 = arith.constant 0 : index
    %328 = vector.load %arg6[%c0_98, %c0_99] : memref<16x128xf32, #tpu.memory_space<vmem>>, vector<16x128xf32>
    tpu.vector_store %arg6[%c0_98, %c0_99], %327 {strides = array<i32>} : memref<16x128xf32, #tpu.memory_space<vmem>>, vector<16x128xf32>,
    return
  }
}

</mosaic_0001>

<llo_original>
// kernel: decoder_forward.1
$region0: #{decoder_forward.1}
  #allocation0 [shape = 'u32[]', space=smem, size = 0x4, offset = 0x4, fixed_abs, tag = 'smem constant byte address 0x4 - core index']
  #allocation1 [shape = 'u32[144,128]{1,0:T(1,128)}', space=vmem, size = 0x12000, scoped, tag = 'internal scratch']
  #allocation2 [shape = 'f32[16,128]{1,0:T(8,128)}', space=vmem, size = 0x2000, scoped, tag = 'scratch operand']
  #allocation3 [shape = 'f32[16,32]{1,0:T(8,128)}', space=vmem, size = 0x2000, scoped, tag = 'scratch operand']
  %s0 = inlined_call_operand.vmem [shape: f32[16,32], index: 0, kind: input, shape index: {}]
  %s1 = inlined_call_operand.vmem [shape: f32[32,128], index: 1, kind: input, shape index: {}]
  %s2 = inlined_call_operand.vmem [shape: f32[32,128], index: 2, kind: input, shape index: {}]
  %s3 = inlined_call_operand.vmem [shape: f32[1,128], index: 3, kind: input, shape index: {}]
  %s4 = inlined_call_operand.vmem [shape: f32[32,128], index: 4, kind: input, shape index: {}]
  %s5 = inlined_call_operand.vmem [shape: f32[1,128], index: 5, kind: input, shape index: {}]
  %s6 = inlined_call_operand.hbm [shape: f32[16,128], index: 6, kind: output, shape index: {}]
  %s7 = sld [smem:[#allocation0]]
  $region34: #{decoder_forward.1} parent=0
    _
  %s9 = ssub.s32 1, %s7
  %s10 = scalar_select 0, %s9, %s7
  $region1: #{decoder_forward.1} parent=0
    #allocation4 [shape = 'u8[8192]{0}', space=vmem, size = 0x2000, scoped, tag = 'output window, operand 0, single buffered']
    #allocation5 [shape = 's32[1]{0}', space=sflag, size = 0x4, scoped, tag = 'scoped memory for decoder_forward.1']
    %11 = vsyncpa [#allocation5], 0
    // Predicated region
    $region2: #{decoder_forward.1} parent=1 // pred_check
      _
    $region3: #{decoder_forward.1} parent=1 // pred_check_branch
      %13 = sbr.rel (0) target = $region5
    $region4: #{decoder_forward.1} parent=1 // pred_region
      _
    $region5: #{decoder_forward.1} parent=1 // pred_fallthru
      _
    // Predicated region
    $region6: #{decoder_forward.1} parent=1 // pred_check
      _
    $region7: #{decoder_forward.1} parent=1 // pred_check_branch
      %15 = sbr.rel (0) target = $region9
    $region8: #{decoder_forward.1} parent=1 // pred_region
      _
    $region9: #{decoder_forward.1} parent=1 // pred_fallthru
      _
    // Predicated region
    $region10: #{decoder_forward.1} parent=1 // pred_check
      _
    $region11: #{decoder_forward.1} parent=1 // pred_check_branch
      %17 = sbr.rel (0) target = $region13
    $region12: #{decoder_forward.1} parent=1 // pred_region
      _
    $region13: #{decoder_forward.1} parent=1 // pred_fallthru
      _
    // Predicated region
    $region14: #{decoder_forward.1} parent=1 // pred_check
      _
    $region15: #{decoder_forward.1} parent=1 // pred_check_branch
      %19 = sbr.rel (0) target = $region17
    $region16: #{decoder_forward.1} parent=1 // pred_region
      _
    $region17: #{decoder_forward.1} parent=1 // pred_fallthru
      _
    // Predicated region
    $region18: #{decoder_forward.1} parent=1 // pred_check
      _
    $region19: #{decoder_forward.1} parent=1 // pred_check_branch
      %21 = sbr.rel (0) target = $region21
    $region20: #{decoder_forward.1} parent=1 // pred_region
      _
    $region21: #{decoder_forward.1} parent=1 // pred_fallthru
      _
    // Predicated region
    $region22: #{decoder_forward.1} parent=1 // pred_check
      _
    $region23: #{decoder_forward.1} parent=1 // pred_check_branch
      %23 = sbr.rel (0) target = $region25
    $region24: #{decoder_forward.1} parent=1 // pred_region
      _
    $region25: #{decoder_forward.1} parent=1 // pred_fallthru
      _
    %v24 = vld [vmem:[%s0] sm:$0xff]
    %v25 = vld [vmem:[%s0 + $0x8] sm:$0xff]
    %v26 = vld [vmem:[%s1] sm:$0xff]
    %v27 = vld [vmem:[%s1 + $0x8] sm:$0xff]
    %v28 = vld [vmem:[%s1 + $0x10] sm:$0xff]
    %v29 = vld [vmem:[%s1 + $0x18] sm:$0xff]
    %v30 = vld [vmem:[%s3] sm:$0x1]
    %v32 = vlaneseq
    %v33 = vshrl.u32 %v32, 7
    %v34 = vsub.s32 0, %v33
    %v35 = vrot.slane %v30, %v34
    %vm37 = vcmask 261120
    %v39 = vsel %vm37, %v24, 0
    %v42 = vsel %vm37, %v25, 0
    %44 = vmatprep.subr.mxu0 0.0
    %45 = vmatpush1.msra.mxu0 0.0
    %46 = vmatprep.subr.mxu0 0.0
    %47 = vmatpush1.msra.mxu0 0.0
    %48 = vmatprep.subr.mxu0 0.0
    %49 = vmatpush1.msra.mxu0 0.0
    %50 = vmatprep.subr.mxu0 0.0
    %51 = vmatpush1.msra.mxu0 0.0
    %52 = vmatprep.subr.mxu0 0.0
    %53 = vmatpush1.msra.mxu0 0.0
    %54 = vmatprep.subr.mxu0 0.0
    %55 = vmatpush1.msra.mxu0 0.0
    %56 = vmatprep.subr.mxu0 0.0
    %57 = vmatpush1.msra.mxu0 0.0
    %58 = vmatprep.subr.mxu0 0.0
    %59 = vmatpush1.msra.mxu0 0.0
    %60 = vmatprep.subr.mxu0 0.0
    %61 = vmatpush1.msra.mxu0 0.0
    %62 = vmatprep.subr.mxu0 0.0
    %63 = vmatpush1.msra.mxu0 0.0
    %64 = vmatprep.subr.mxu0 0.0
    %65 = vmatpush1.msra.mxu0 0.0
    %66 = vmatprep.subr.mxu0 0.0
    %67 = vmatpush1.msra.mxu0 0.0
    %68 = vmatprep.subr.mxu0 0.0
    %69 = vmatpush1.msra.mxu0 %v29
    %70 = vmatprep.subr.mxu0 0.0
    %71 = vmatpush1.msra.mxu0 %v28
    %72 = vmatprep.subr.mxu0 0.0
    %73 = vmatpush1.msra.mxu0 %v27
    %74 = vmatprep.subr.mxu0 0.0
    %75 = vmatpush1.msra.mxu0 %v26
    %76 = vmatprep.subr.mxu0 0.0
    %77 = vmatpush2.msra.mxu0 0.0
    %78 = vmatprep.subr.mxu0 0.0
    %79 = vmatpush2.msra.mxu0 0.0
    %80 = vmatprep.subr.mxu0 0.0
    %81 = vmatpush2.msra.mxu0 0.0
    %82 = vmatprep.subr.mxu0 0.0
    %83 = vmatpush2.msra.mxu0 0.0
    %84 = vmatprep.subr.mxu0 0.0
    %85 = vmatpush2.msra.mxu0 0.0
    %86 = vmatprep.subr.mxu0 0.0
    %87 = vmatpush2.msra.mxu0 0.0
    %88 = vmatprep.subr.mxu0 0.0
    %89 = vmatpush2.msra.mxu0 0.0
    %90 = vmatprep.subr.mxu0 0.0
    %91 = vmatpush2.msra.mxu0 0.0
    %92 = vmatprep.subr.mxu0 0.0
    %93 = vmatpush2.msra.mxu0 0.0
    %94 = vmatprep.subr.mxu0 0.0
    %95 = vmatpush2.msra.mxu0 0.0
    %96 = vmatprep.subr.mxu0 0.0
    %97 = vmatpush2.msra.mxu0 0.0
    %98 = vmatprep.subr.mxu0 0.0
    %99 = vmatpush2.msra.mxu0 0.0
    %100 = vmatprep.subr.mxu0 0.0
    %101 = vmatpush2.msra.mxu0 0.0
    %102 = vmatprep.subr.mxu0 0.0
    %103 = vmatpush2.msra.mxu0 0.0
    %104 = vmatprep.subr.mxu0 0.0
    %105 = vmatpush2.msra.mxu0 0.0
    %106 = vmatprep.subr.mxu0 0.0
    %107 = vmatpush2.msra.mxu0 0.0
    %108 = vmatprep.mubr.f32.mxu0 0.0
    %109 = vmatmul.mubr.f32.gmra.mxu0 %v39
    %v110 = vpop.f32.mrf.mxu0
    %v111 = vadd.f32 %v35, %v110
    %v112 = vpop.f32.mrf.mxu0
    %113 = vmatprep.mubr.f32.mxu0 0.0
    %114 = vmatmul.mubr.f32.gmra.mxu0 %v42
    %v115 = vpop.f32.mrf.mxu0
    %v116 = vadd.f32 %v35, %v115
    %v117 = vpop.f32.mrf.mxu0
    %118 = vdwg.mxu0
    %119 = vst [vmem:[#allocation2] sm:$0xff] %v111
    %120 = vst [vmem:[#allocation2 + $0x8] sm:$0xff] %v116
    %v121 = vld [vmem:[%s2] sm:$0xff]
    %v122 = vld [vmem:[%s2 + $0x8] sm:$0xff]
    %v123 = vld [vmem:[%s2 + $0x10] sm:$0xff]
    %v124 = vld [vmem:[%s2 + $0x18] sm:$0xff]
    %v125 = vld [vmem:[#allocation2] sm:$0x3]
    %v127 = vsel %vm37, 0.0, 0
    %129 = vmatprep.subr.mxu0 0.0
    %130 = vmatpush1.msra.mxu0 0.0
    %131 = vmatprep.subr.mxu0 0.0
    %132 = vmatpush1.msra.mxu0 0.0
    %133 = vmatprep.subr.mxu0 0.0
    %134 = vmatpush1.msra.mxu0 0.0
    %135 = vmatprep.subr.mxu0 0.0
    %136 = vmatpush1.msra.mxu0 0.0
    %137 = vmatprep.subr.mxu0 0.0
    %138 = vmatpush1.msra.mxu0 0.0
    %139 = vmatprep.subr.mxu0 0.0
    %140 = vmatpush1.msra.mxu0 0.0
    %141 = vmatprep.subr.mxu0 0.0
    %142 = vmatpush1.msra.mxu0 0.0
    %143 = vmatprep.subr.mxu0 0.0
    %144 = vmatpush1.msra.mxu0 0.0
    %145 = vmatprep.subr.mxu0 0.0
    %146 = vmatpush1.msra.mxu0 0.0
    %147 = vmatprep.subr.mxu0 0.0
    %148 = vmatpush1.msra.mxu0 0.0
    %149 = vmatprep.subr.mxu0 0.0
    %150 = vmatpush1.msra.mxu0 0.0
    %151 = vmatprep.subr.mxu0 0.0
    %152 = vmatpush1.msra.mxu0 0.0
    %153 = vmatprep.subr.mxu0 0.0
    %154 = vmatpush1.msra.mxu0 %v124
    %155 = vmatprep.subr.mxu0 0.0
    %156 = vmatpush1.msra.mxu0 %v123
    %157 = vmatprep.subr.mxu0 0.0
    %158 = vmatpush1.msra.mxu0 %v122
    %159 = vmatprep.subr.mxu0 0.0
    %160 = vmatpush1.msra.mxu0 %v121
    %161 = vmatprep.subr.mxu0 0.0
    %162 = vmatpush2.msra.mxu0 0.0
    %163 = vmatprep.subr.mxu0 0.0
    %164 = vmatpush2.msra.mxu0 0.0
    %165 = vmatprep.subr.mxu0 0.0
    %166 = vmatpush2.msra.mxu0 0.0
    %167 = vmatprep.subr.mxu0 0.0
    %168 = vmatpush2.msra.mxu0 0.0
    %169 = vmatprep.subr.mxu0 0.0
    %170 = vmatpush2.msra.mxu0 0.0
    %171 = vmatprep.subr.mxu0 0.0
    %172 = vmatpush2.msra.mxu0 0.0
    %173 = vmatprep.subr.mxu0 0.0
    %174 = vmatpush2.msra.mxu0 0.0
    %175 = vmatprep.subr.mxu0 0.0
    %176 = vmatpush2.msra.mxu0 0.0
    %177 = vmatprep.subr.mxu0 0.0
    %178 = vmatpush2.msra.mxu0 0.0
    %179 = vmatprep.subr.mxu0 0.0
    %180 = vmatpush2.msra.mxu0 0.0
    %181 = vmatprep.subr.mxu0 0.0
    %182 = vmatpush2.msra.mxu0 0.0
    %183 = vmatprep.subr.mxu0 0.0
    %184 = vmatpush2.msra.mxu0 0.0
    %185 = vmatprep.subr.mxu0 0.0
    %186 = vmatpush2.msra.mxu0 0.0
    %187 = vmatprep.subr.mxu0 0.0
    %188 = vmatpush2.msra.mxu0 0.0
    %189 = vmatprep.subr.mxu0 0.0
    %190 = vmatpush2.msra.mxu0 0.0
    %191 = vmatprep.subr.mxu0 0.0
    %192 = vmatpush2.msra.mxu0 0.0
    %193 = vmatprep.mubr.f32.mxu0 0.0
    %194 = vmatmul.mubr.f32.gmra.mxu0 %v127
    %v195 = vpop.f32.mrf.mxu0
    %v196 = vadd.f32 0.0, %v195
    %v197 = vpop.f32.mrf.mxu0
    %198 = vdwg.mxu0
    %v199 = vadd.f32 %v125, %v196
    %v200 = vxor.u32 %v199, 2147483648
    %v201 = vmul.f32 %v200, 1.442695
    %v202 = vpow.pop %v201
    %v203 = vadd.f32 %v202, 1.0
    %v204 = vrcp.pop %v203
    %v205 = vmul.f32 1.0, %v204
    %v206 = vtanh.pop %v199
    %v207 = vmul.f32 %v205, 0.0
    %209 = vrot.lane.b32.xlu0 %v206, 64
    %v210 = vpop.permute.xlu0 %209
    %v212 = vmul.f32 %v205, %v210
    %214 = vrot.lane.b32.xlu0 %v212, 32
    %v215 = vpop.permute.xlu0 %214
    %v217 = vadd.f32 %v207, %v215
    %v218 = vtanh.pop %v217
    %220 = vrot.lane.b32.xlu0 %v218, 64
    %v221 = vpop.permute.xlu0 %220
    %v223 = vmul.f32 %v205, %v221
    %225 = vrot.lane.b32.xlu0 %v223, 32
    %v226 = vpop.permute.xlu0 %225
    %vm228 = vcmask 253952
    %229 = vst.msk [vmem:[#allocation3] sm:$0x1] %vm228, %v226
    %vm230 = vcmask 254977
    %231 = vst.msk [vmem:[#allocation3 + $0x7] sm:$0x2] %vm230, %v226
    %s232 = scalar_lea.vmem [#allocation2], 2
    %v233 = vld [vmem:[%s232] sm:$0x3]
    %v234 = vsel %vm37, %v226, 0
    %236 = vmatprep.subr.mxu0 0.0
    %237 = vmatpush1.msra.mxu0 0.0
    %238 = vmatprep.subr.mxu0 0.0
    %239 = vmatpush1.msra.mxu0 0.0
    %240 = vmatprep.subr.mxu0 0.0
    %241 = vmatpush1.msra.mxu0 0.0
    %242 = vmatprep.subr.mxu0 0.0
    %243 = vmatpush1.msra.mxu0 0.0
    %244 = vmatprep.subr.mxu0 0.0
    %245 = vmatpush1.msra.mxu0 0.0
    %246 = vmatprep.subr.mxu0 0.0
    %247 = vmatpush1.msra.mxu0 0.0
    %248 = vmatprep.subr.mxu0 0.0
    %249 = vmatpush1.msra.mxu0 0.0
    %250 = vmatprep.subr.mxu0 0.0
    %251 = vmatpush1.msra.mxu0 0.0
    %252 = vmatprep.subr.mxu0 0.0
    %253 = vmatpush1.msra.mxu0 0.0
    %254 = vmatprep.subr.mxu0 0.0
    %255 = vmatpush1.msra.mxu0 0.0
    %256 = vmatprep.subr.mxu0 0.0
    %257 = vmatpush1.msra.mxu0 0.0
    %258 = vmatprep.subr.mxu0 0.0
    %259 = vmatpush1.msra.mxu0 0.0
    %260 = vmatprep.subr.mxu0 0.0
    %261 = vmatpush1.msra.mxu0 %v124
    %262 = vmatprep.subr.mxu0 0.0
    %263 = vmatpush1.msra.mxu0 %v123
    %264 = vmatprep.subr.mxu0 0.0
    %265 = vmatpush1.msra.mxu0 %v122
    %266 = vmatprep.subr.mxu0 0.0
    %267 = vmatpush1.msra.mxu0 %v121
    %268 = vmatprep.subr.mxu0 0.0
    %269 = vmatpush2.msra.mxu0 0.0
    %270 = vmatprep.subr.mxu0 0.0
    %271 = vmatpush2.msra.mxu0 0.0
    %272 = vmatprep.subr.mxu0 0.0
    %273 = vmatpush2.msra.mxu0 0.0
    %274 = vmatprep.subr.mxu0 0.0
    %275 = vmatpush2.msra.mxu0 0.0
    %276 = vmatprep.subr.mxu0 0.0
    %277 = vmatpush2.msra.mxu0 0.0
    %278 = vmatprep.subr.mxu0 0.0
    %279 = vmatpush2.msra.mxu0 0.0
    %280 = vmatprep.subr.mxu0 0.0
    %281 = vmatpush2.msra.mxu0 0.0
    %282 = vmatprep.subr.mxu0 0.0
    %283 = vmatpush2.msra.mxu0 0.0
    %284 = vmatprep.subr.mxu0 0.0
    %285 = vmatpush2.msra.mxu0 0.0
    %286 = vmatprep.subr.mxu0 0.0
    %287 = vmatpush2.msra.mxu0 0.0
    %288 = vmatprep.subr.mxu0 0.0
    %289 = vmatpush2.msra.mxu0 0.0
    %290 = vmatprep.subr.mxu0 0.0
    %291 = vmatpush2.msra.mxu0 0.0
    %292 = vmatprep.subr.mxu0 0.0
    %293 = vmatpush2.msra.mxu0 0.0
    %294 = vmatprep.subr.mxu0 0.0
    %295 = vmatpush2.msra.mxu0 0.0
    %296 = vmatprep.subr.mxu0 0.0
    %297 = vmatpush2.msra.mxu0 0.0
    %298 = vmatprep.subr.mxu0 0.0
    %299 = vmatpush2.msra.mxu0 0.0
    %300 = vmatprep.mubr.f32.mxu0 0.0
    %301 = vmatmul.mubr.f32.gmra.mxu0 %v234
    %v302 = vpop.f32.mrf.mxu0
    %v303 = vadd.f32 0.0, %v302
    %v304 = vpop.f32.mrf.mxu0
    %305 = vdwg.mxu0
    %v306 = vadd.f32 %v233, %v303
    %v307 = vxor.u32 %v306, 2147483648
    %v308 = vmul.f32 %v307, 1.442695
    %v309 = vpow.pop %v308
    %v310 = vadd.f32 %v309, 1.0
    %v311 = vrcp.pop %v310
    %v312 = vmul.f32 1.0, %v311
    %v313 = vtanh.pop %v306
    %v314 = vmul.f32 %v312, %v217
    %316 = vrot.lane.b32.xlu0 %v313, 64
    %v317 = vpop.permute.xlu0 %316
    %v319 = vmul.f32 %v312, %v317
    %321 = vrot.lane.b32.xlu0 %v319, 32
    %v322 = vpop.permute.xlu0 %321
    %v324 = vadd.f32 %v314, %v322
    %v325 = vtanh.pop %v324
    %327 = vrot.lane.b32.xlu0 %v325, 64
    %v328 = vpop.permute.xlu0 %327
    %v330 = vmul.f32 %v312, %v328
    %332 = vrot.lane.b32.xlu0 %v330, 32
    %v333 = vpop.permute.xlu0 %332
    %335 = vst.msk [vmem:[#allocation3 + $0x1] sm:$0x1] %vm228, %v333
    %336 = vst.msk [vmem:[#allocation3 + $0x8] sm:$0x2] %vm230, %v333
    %s337 = scalar_lea.vmem [#allocation2], 4
    %v338 = vld [vmem:[%s337] sm:$0x3]
    %v339 = vsel %vm37, %v333, 0
    %341 = vmatprep.subr.mxu0 0.0
    %342 = vmatpush1.msra.mxu0 0.0
    %343 = vmatprep.subr.mxu0 0.0
    %344 = vmatpush1.msra.mxu0 0.0
    %345 = vmatprep.subr.mxu0 0.0
    %346 = vmatpush1.msra.mxu0 0.0
    %347 = vmatprep.subr.mxu0 0.0
    %348 = vmatpush1.msra.mxu0 0.0
    %349 = vmatprep.subr.mxu0 0.0
    %350 = vmatpush1.msra.mxu0 0.0
    %351 = vmatprep.subr.mxu0 0.0
    %352 = vmatpush1.msra.mxu0 0.0
    %353 = vmatprep.subr.mxu0 0.0
    %354 = vmatpush1.msra.mxu0 0.0
    %355 = vmatprep.subr.mxu0 0.0
    %356 = vmatpush1.msra.mxu0 0.0
    %357 = vmatprep.subr.mxu0 0.0
    %358 = vmatpush1.msra.mxu0 0.0
    %359 = vmatprep.subr.mxu0 0.0
    %360 = vmatpush1.msra.mxu0 0.0
    %361 = vmatprep.subr.mxu0 0.0
    %362 = vmatpush1.msra.mxu0 0.0
    %363 = vmatprep.subr.mxu0 0.0
    %364 = vmatpush1.msra.mxu0 0.0
    %365 = vmatprep.subr.mxu0 0.0
    %366 = vmatpush1.msra.mxu0 %v124
    %367 = vmatprep.subr.mxu0 0.0
    %368 = vmatpush1.msra.mxu0 %v123
    %369 = vmatprep.subr.mxu0 0.0
    %370 = vmatpush1.msra.mxu0 %v122
    %371 = vmatprep.subr.mxu0 0.0
    %372 = vmatpush1.msra.mxu0 %v121
    %373 = vmatprep.subr.mxu0 0.0
    %374 = vmatpush2.msra.mxu0 0.0
    %375 = vmatprep.subr.mxu0 0.0
    %376 = vmatpush2.msra.mxu0 0.0
    %377 = vmatprep.subr.mxu0 0.0
    %378 = vmatpush2.msra.mxu0 0.0
    %379 = vmatprep.subr.mxu0 0.0
    %380 = vmatpush2.msra.mxu0 0.0
    %381 = vmatprep.subr.mxu0 0.0
    %382 = vmatpush2.msra.mxu0 0.0
    %383 = vmatprep.subr.mxu0 0.0
    %384 = vmatpush2.msra.mxu0 0.0
    %385 = vmatprep.subr.mxu0 0.0
    %386 = vmatpush2.msra.mxu0 0.0
    %387 = vmatprep.subr.mxu0 0.0
    %388 = vmatpush2.msra.mxu0 0.0
    %389 = vmatprep.subr.mxu0 0.0
    %390 = vmatpush2.msra.mxu0 0.0
    %391 = vmatprep.subr.mxu0 0.0
    %392 = vmatpush2.msra.mxu0 0.0
    %393 = vmatprep.subr.mxu0 0.0
    %394 = vmatpush2.msra.mxu0 0.0
    %395 = vmatprep.subr.mxu0 0.0
    %396 = vmatpush2.msra.mxu0 0.0
    %397 = vmatprep.subr.mxu0 0.0
    %398 = vmatpush2.msra.mxu0 0.0
    %399 = vmatprep.subr.mxu0 0.0
    %400 = vmatpush2.msra.mxu0 0.0
    %401 = vmatprep.subr.mxu0 0.0
    %402 = vmatpush2.msra.mxu0 0.0
    %403 = vmatprep.subr.mxu0 0.0
    %404 = vmatpush2.msra.mxu0 0.0
    %405 = vmatprep.mubr.f32.mxu0 0.0
    %406 = vmatmul.mubr.f32.gmra.mxu0 %v339
    %v407 = vpop.f32.mrf.mxu0
    %v408 = vadd.f32 0.0, %v407
    %v409 = vpop.f32.mrf.mxu0
    %410 = vdwg.mxu0
    %v411 = vadd.f32 %v338, %v408
    %v412 = vxor.u32 %v411, 2147483648
    %v413 = vmul.f32 %v412, 1.442695
    %v414 = vpow.pop %v413
    %v415 = vadd.f32 %v414, 1.0
    %v416 = vrcp.pop %v415
    %v417 = vmul.f32 1.0, %v416
    %v418 = vtanh.pop %v411
    %v419 = vmul.f32 %v417, %v324
    %421 = vrot.lane.b32.xlu0 %v418, 64
    %v422 = vpop.permute.xlu0 %421
    %v424 = vmul.f32 %v417, %v422
    %426 = vrot.lane.b32.xlu0 %v424, 32
    %v427 = vpop.permute.xlu0 %426
    %v429 = vadd.f32 %v419, %v427
    %v430 = vtanh.pop %v429
    %432 = vrot.lane.b32.xlu0 %v430, 64
    %v433 = vpop.permute.xlu0 %432
    %v435 = vmul.f32 %v417, %v433
    %437 = vrot.lane.b32.xlu0 %v435, 32
    %v438 = vpop.permute.xlu0 %437
    %440 = vst.msk [vmem:[#allocation3 + $0x2] sm:$0x1] %vm228, %v438
    %441 = vst.msk [vmem:[#allocation3 + $0x9] sm:$0x2] %vm230, %v438
    %s442 = scalar_lea.vmem [#allocation2], 6
    %v443 = vld [vmem:[%s442] sm:$0x3]
    %v444 = vsel %vm37, %v438, 0
    %446 = vmatprep.subr.mxu0 0.0
    %447 = vmatpush1.msra.mxu0 0.0
    %448 = vmatprep.subr.mxu0 0.0
    %449 = vmatpush1.msra.mxu0 0.0
    %450 = vmatprep.subr.mxu0 0.0
    %451 = vmatpush1.msra.mxu0 0.0
    %452 = vmatprep.subr.mxu0 0.0
    %453 = vmatpush1.msra.mxu0 0.0
    %454 = vmatprep.subr.mxu0 0.0
    %455 = vmatpush1.msra.mxu0 0.0
    %456 = vmatprep.subr.mxu0 0.0
    %457 = vmatpush1.msra.mxu0 0.0
    %458 = vmatprep.subr.mxu0 0.0
    %459 = vmatpush1.msra.mxu0 0.0
    %460 = vmatprep.subr.mxu0 0.0
    %461 = vmatpush1.msra.mxu0 0.0
    %462 = vmatprep.subr.mxu0 0.0
    %463 = vmatpush1.msra.mxu0 0.0
    %464 = vmatprep.subr.mxu0 0.0
    %465 = vmatpush1.msra.mxu0 0.0
    %466 = vmatprep.subr.mxu0 0.0
    %467 = vmatpush1.msra.mxu0 0.0
    %468 = vmatprep.subr.mxu0 0.0
    %469 = vmatpush1.msra.mxu0 0.0
    %470 = vmatprep.subr.mxu0 0.0
    %471 = vmatpush1.msra.mxu0 %v124
    %472 = vmatprep.subr.mxu0 0.0
    %473 = vmatpush1.msra.mxu0 %v123
    %474 = vmatprep.subr.mxu0 0.0
    %475 = vmatpush1.msra.mxu0 %v122
    %476 = vmatprep.subr.mxu0 0.0
    %477 = vmatpush1.msra.mxu0 %v121
    %478 = vmatprep.subr.mxu0 0.0
    %479 = vmatpush2.msra.mxu0 0.0
    %480 = vmatprep.subr.mxu0 0.0
    %481 = vmatpush2.msra.mxu0 0.0
    %482 = vmatprep.subr.mxu0 0.0
    %483 = vmatpush2.msra.mxu0 0.0
    %484 = vmatprep.subr.mxu0 0.0
    %485 = vmatpush2.msra.mxu0 0.0
    %486 = vmatprep.subr.mxu0 0.0
    %487 = vmatpush2.msra.mxu0 0.0
    %488 = vmatprep.subr.mxu0 0.0
    %489 = vmatpush2.msra.mxu0 0.0
    %490 = vmatprep.subr.mxu0 0.0
    %491 = vmatpush2.msra.mxu0 0.0
    %492 = vmatprep.subr.mxu0 0.0
    %493 = vmatpush2.msra.mxu0 0.0
    %494 = vmatprep.subr.mxu0 0.0
    %495 = vmatpush2.msra.mxu0 0.0
    %496 = vmatprep.subr.mxu0 0.0
    %497 = vmatpush2.msra.mxu0 0.0
    %498 = vmatprep.subr.mxu0 0.0
    %499 = vmatpush2.msra.mxu0 0.0
    %500 = vmatprep.subr.mxu0 0.0
    %501 = vmatpush2.msra.mxu0 0.0
    %502 = vmatprep.subr.mxu0 0.0
    %503 = vmatpush2.msra.mxu0 0.0
    %504 = vmatprep.subr.mxu0 0.0
    %505 = vmatpush2.msra.mxu0 0.0
    %506 = vmatprep.subr.mxu0 0.0
    %507 = vmatpush2.msra.mxu0 0.0
    %508 = vmatprep.subr.mxu0 0.0
    %509 = vmatpush2.msra.mxu0 0.0
    %510 = vmatprep.mubr.f32.mxu0 0.0
    %511 = vmatmul.mubr.f32.gmra.mxu0 %v444
    %v512 = vpop.f32.mrf.mxu0
    %v513 = vadd.f32 0.0, %v512
    %v514 = vpop.f32.mrf.mxu0
    %515 = vdwg.mxu0
    %v516 = vadd.f32 %v443, %v513
    %v517 = vxor.u32 %v516, 2147483648
    %v518 = vmul.f32 %v517, 1.442695
    %v519 = vpow.pop %v518
    %v520 = vadd.f32 %v519, 1.0
    %v521 = vrcp.pop %v520
    %v522 = vmul.f32 1.0, %v521
    %v523 = vtanh.pop %v516
    %v524 = vmul.f32 %v522, %v429
    %526 = vrot.lane.b32.xlu0 %v523, 64
    %v527 = vpop.permute.xlu0 %526
    %v529 = vmul.f32 %v522, %v527
    %531 = vrot.lane.b32.xlu0 %v529, 32
    %v532 = vpop.permute.xlu0 %531
    %v534 = vadd.f32 %v524, %v532
    %v535 = vtanh.pop %v534
    %537 = vrot.lane.b32.xlu0 %v535, 64
    %v538 = vpop.permute.xlu0 %537
    %v540 = vmul.f32 %v522, %v538
    %542 = vrot.lane.b32.xlu0 %v540, 32
    %v543 = vpop.permute.xlu0 %542
    %545 = vst.msk [vmem:[#allocation3 + $0x3] sm:$0x1] %vm228, %v543
    %546 = vst.msk [vmem:[#allocation3 + $0xa] sm:$0x2] %vm230, %v543
    %s547 = scalar_lea.vmem [#allocation2], 8
    %v548 = vld [vmem:[%s547] sm:$0x3]
    %v549 = vsel %vm37, %v543, 0
    %551 = vmatprep.subr.mxu0 0.0
    %552 = vmatpush1.msra.mxu0 0.0
    %553 = vmatprep.subr.mxu0 0.0
    %554 = vmatpush1.msra.mxu0 0.0
    %555 = vmatprep.subr.mxu0 0.0
    %556 = vmatpush1.msra.mxu0 0.0
    %557 = vmatprep.subr.mxu0 0.0
    %558 = vmatpush1.msra.mxu0 0.0
    %559 = vmatprep.subr.mxu0 0.0
    %560 = vmatpush1.msra.mxu0 0.0
    %561 = vmatprep.subr.mxu0 0.0
    %562 = vmatpush1.msra.mxu0 0.0
    %563 = vmatprep.subr.mxu0 0.0
    %564 = vmatpush1.msra.mxu0 0.0
    %565 = vmatprep.subr.mxu0 0.0
    %566 = vmatpush1.msra.mxu0 0.0
    %567 = vmatprep.subr.mxu0 0.0
    %568 = vmatpush1.msra.mxu0 0.0
    %569 = vmatprep.subr.mxu0 0.0
    %570 = vmatpush1.msra.mxu0 0.0
    %571 = vmatprep.subr.mxu0 0.0
    %572 = vmatpush1.msra.mxu0 0.0
    %573 = vmatprep.subr.mxu0 0.0
    %574 = vmatpush1.msra.mxu0 0.0
    %575 = vmatprep.subr.mxu0 0.0
    %576 = vmatpush1.msra.mxu0 %v124
    %577 = vmatprep.subr.mxu0 0.0
    %578 = vmatpush1.msra.mxu0 %v123
    %579 = vmatprep.subr.mxu0 0.0
    %580 = vmatpush1.msra.mxu0 %v122
    %581 = vmatprep.subr.mxu0 0.0
    %582 = vmatpush1.msra.mxu0 %v121
    %583 = vmatprep.subr.mxu0 0.0
    %584 = vmatpush2.msra.mxu0 0.0
    %585 = vmatprep.subr.mxu0 0.0
    %586 = vmatpush2.msra.mxu0 0.0
    %587 = vmatprep.subr.mxu0 0.0
    %588 = vmatpush2.msra.mxu0 0.0
    %589 = vmatprep.subr.mxu0 0.0
    %590 = vmatpush2.msra.mxu0 0.0
    %591 = vmatprep.subr.mxu0 0.0
    %592 = vmatpush2.msra.mxu0 0.0
    %593 = vmatprep.subr.mxu0 0.0
    %594 = vmatpush2.msra.mxu0 0.0
    %595 = vmatprep.subr.mxu0 0.0
    %596 = vmatpush2.msra.mxu0 0.0
    %597 = vmatprep.subr.mxu0 0.0
    %598 = vmatpush2.msra.mxu0 0.0
    %599 = vmatprep.subr.mxu0 0.0
    %600 = vmatpush2.msra.mxu0 0.0
    %601 = vmatprep.subr.mxu0 0.0
    %602 = vmatpush2.msra.mxu0 0.0
    %603 = vmatprep.subr.mxu0 0.0
    %604 = vmatpush2.msra.mxu0 0.0
    %605 = vmatprep.subr.mxu0 0.0
    %606 = vmatpush2.msra.mxu0 0.0
    %607 = vmatprep.subr.mxu0 0.0
    %608 = vmatpush2.msra.mxu0 0.0
    %609 = vmatprep.subr.mxu0 0.0
    %610 = vmatpush2.msra.mxu0 0.0
    %611 = vmatprep.subr.mxu0 0.0
    %612 = vmatpush2.msra.mxu0 0.0
    %613 = vmatprep.subr.mxu0 0.0
    %614 = vmatpush2.msra.mxu0 0.0
    %615 = vmatprep.mubr.f32.mxu0 0.0
    %616 = vmatmul.mubr.f32.gmra.mxu0 %v549
    %v617 = vpop.f32.mrf.mxu0
    %v618 = vadd.f32 0.0, %v617
    %v619 = vpop.f32.mrf.mxu0
    %620 = vdwg.mxu0
    %v621 = vadd.f32 %v548, %v618
    %v622 = vxor.u32 %v621, 2147483648
    %v623 = vmul.f32 %v622, 1.442695
    %v624 = vpow.pop %v623
    %v625 = vadd.f32 %v624, 1.0
    %v626 = vrcp.pop %v625
    %v627 = vmul.f32 1.0, %v626
    %v628 = vtanh.pop %v621
    %v629 = vmul.f32 %v627, %v534
    %631 = vrot.lane.b32.xlu0 %v628, 64
    %v632 = vpop.permute.xlu0 %631
    %v634 = vmul.f32 %v627, %v632
    %636 = vrot.lane.b32.xlu0 %v634, 32
    %v637 = vpop.permute.xlu0 %636
    %v639 = vadd.f32 %v629, %v637
    %v640 = vtanh.pop %v639
    %642 = vrot.lane.b32.xlu0 %v640, 64
    %v643 = vpop.permute.xlu0 %642
    %v645 = vmul.f32 %v627, %v643
    %647 = vrot.lane.b32.xlu0 %v645, 32
    %v648 = vpop.permute.xlu0 %647
    %650 = vst.msk [vmem:[#allocation3 + $0x4] sm:$0x1] %vm228, %v648
    %651 = vst.msk [vmem:[#allocation3 + $0xb] sm:$0x2] %vm230, %v648
    %s652 = scalar_lea.vmem [#allocation2], 10
    %v653 = vld [vmem:[%s652] sm:$0x3]
    %v654 = vsel %vm37, %v648, 0
    %656 = vmatprep.subr.mxu0 0.0
    %657 = vmatpush1.msra.mxu0 0.0
    %658 = vmatprep.subr.mxu0 0.0
    %659 = vmatpush1.msra.mxu0 0.0
    %660 = vmatprep.subr.mxu0 0.0
    %661 = vmatpush1.msra.mxu0 0.0
    %662 = vmatprep.subr.mxu0 0.0
    %663 = vmatpush1.msra.mxu0 0.0
    %664 = vmatprep.subr.mxu0 0.0
    %665 = vmatpush1.msra.mxu0 0.0
    %666 = vmatprep.subr.mxu0 0.0
    %667 = vmatpush1.msra.mxu0 0.0
    %668 = vmatprep.subr.mxu0 0.0
    %669 = vmatpush1.msra.mxu0 0.0
    %670 = vmatprep.subr.mxu0 0.0
    %671 = vmatpush1.msra.mxu0 0.0
    %672 = vmatprep.subr.mxu0 0.0
    %673 = vmatpush1.msra.mxu0 0.0
    %674 = vmatprep.subr.mxu0 0.0
    %675 = vmatpush1.msra.mxu0 0.0
    %676 = vmatprep.subr.mxu0 0.0
    %677 = vmatpush1.msra.mxu0 0.0
    %678 = vmatprep.subr.mxu0 0.0
    %679 = vmatpush1.msra.mxu0 0.0
    %680 = vmatprep.subr.mxu0 0.0
    %681 = vmatpush1.msra.mxu0 %v124
    %682 = vmatprep.subr.mxu0 0.0
    %683 = vmatpush1.msra.mxu0 %v123
    %684 = vmatprep.subr.mxu0 0.0
    %685 = vmatpush1.msra.mxu0 %v122
    %686 = vmatprep.subr.mxu0 0.0
    %687 = vmatpush1.msra.mxu0 %v121
    %688 = vmatprep.subr.mxu0 0.0
    %689 = vmatpush2.msra.mxu0 0.0
    %690 = vmatprep.subr.mxu0 0.0
    %691 = vmatpush2.msra.mxu0 0.0
    %692 = vmatprep.subr.mxu0 0.0
    %693 = vmatpush2.msra.mxu0 0.0
    %694 = vmatprep.subr.mxu0 0.0
    %695 = vmatpush2.msra.mxu0 0.0
    %696 = vmatprep.subr.mxu0 0.0
    %697 = vmatpush2.msra.mxu0 0.0
    %698 = vmatprep.subr.mxu0 0.0
    %699 = vmatpush2.msra.mxu0 0.0
    %700 = vmatprep.subr.mxu0 0.0
    %701 = vmatpush2.msra.mxu0 0.0
    %702 = vmatprep.subr.mxu0 0.0
    %703 = vmatpush2.msra.mxu0 0.0
    %704 = vmatprep.subr.mxu0 0.0
    %705 = vmatpush2.msra.mxu0 0.0
    %706 = vmatprep.subr.mxu0 0.0
    %707 = vmatpush2.msra.mxu0 0.0
    %708 = vmatprep.subr.mxu0 0.0
    %709 = vmatpush2.msra.mxu0 0.0
    %710 = vmatprep.subr.mxu0 0.0
    %711 = vmatpush2.msra.mxu0 0.0
    %712 = vmatprep.subr.mxu0 0.0
    %713 = vmatpush2.msra.mxu0 0.0
    %714 = vmatprep.subr.mxu0 0.0
    %715 = vmatpush2.msra.mxu0 0.0
    %716 = vmatprep.subr.mxu0 0.0
    %717 = vmatpush2.msra.mxu0 0.0
    %718 = vmatprep.subr.mxu0 0.0
    %719 = vmatpush2.msra.mxu0 0.0
    %720 = vmatprep.mubr.f32.mxu0 0.0
    %721 = vmatmul.mubr.f32.gmra.mxu0 %v654
    %v722 = vpop.f32.mrf.mxu0
    %v723 = vadd.f32 0.0, %v722
    %v724 = vpop.f32.mrf.mxu0
    %725 = vdwg.mxu0
    %v726 = vadd.f32 %v653, %v723
    %v727 = vxor.u32 %v726, 2147483648
    %v728 = vmul.f32 %v727, 1.442695
    %v729 = vpow.pop %v728
    %v730 = vadd.f32 %v729, 1.0
    %v731 = vrcp.pop %v730
    %v732 = vmul.f32 1.0, %v731
    %v733 = vtanh.pop %v726
    %v734 = vmul.f32 %v732, %v639
    %736 = vrot.lane.b32.xlu0 %v733, 64
    %v737 = vpop.permute.xlu0 %736
    %v739 = vmul.f32 %v732, %v737
    %741 = vrot.lane.b32.xlu0 %v739, 32
    %v742 = vpop.permute.xlu0 %741
    %v744 = vadd.f32 %v734, %v742
    %v745 = vtanh.pop %v744
    %747 = vrot.lane.b32.xlu0 %v745, 64
    %v748 = vpop.permute.xlu0 %747
    %v750 = vmul.f32 %v732, %v748
    %752 = vrot.lane.b32.xlu0 %v750, 32
    %v753 = vpop.permute.xlu0 %752
    %755 = vst.msk [vmem:[#allocation3 + $0x5] sm:$0x1] %vm228, %v753
    %756 = vst.msk [vmem:[#allocation3 + $0xc] sm:$0x2] %vm230, %v753
    %s757 = scalar_lea.vmem [#allocation2], 12
    %v758 = vld [vmem:[%s757] sm:$0x3]
    %v759 = vsel %vm37, %v753, 0
    %761 = vmatprep.subr.mxu0 0.0
    %762 = vmatpush1.msra.mxu0 0.0
    %763 = vmatprep.subr.mxu0 0.0
    %764 = vmatpush1.msra.mxu0 0.0
    %765 = vmatprep.subr.mxu0 0.0
    %766 = vmatpush1.msra.mxu0 0.0
    %767 = vmatprep.subr.mxu0 0.0
    %768 = vmatpush1.msra.mxu0 0.0
    %769 = vmatprep.subr.mxu0 0.0
    %770 = vmatpush1.msra.mxu0 0.0
    %771 = vmatprep.subr.mxu0 0.0
    %772 = vmatpush1.msra.mxu0 0.0
    %773 = vmatprep.subr.mxu0 0.0
    %774 = vmatpush1.msra.mxu0 0.0
    %775 = vmatprep.subr.mxu0 0.0
    %776 = vmatpush1.msra.mxu0 0.0
    %777 = vmatprep.subr.mxu0 0.0
    %778 = vmatpush1.msra.mxu0 0.0
    %779 = vmatprep.subr.mxu0 0.0
    %780 = vmatpush1.msra.mxu0 0.0
    %781 = vmatprep.subr.mxu0 0.0
    %782 = vmatpush1.msra.mxu0 0.0
    %783 = vmatprep.subr.mxu0 0.0
    %784 = vmatpush1.msra.mxu0 0.0
    %785 = vmatprep.subr.mxu0 0.0
    %786 = vmatpush1.msra.mxu0 %v124
    %787 = vmatprep.subr.mxu0 0.0
    %788 = vmatpush1.msra.mxu0 %v123
    %789 = vmatprep.subr.mxu0 0.0
    %790 = vmatpush1.msra.mxu0 %v122
    %791 = vmatprep.subr.mxu0 0.0
    %792 = vmatpush1.msra.mxu0 %v121
    %793 = vmatprep.subr.mxu0 0.0
    %794 = vmatpush2.msra.mxu0 0.0
    %795 = vmatprep.subr.mxu0 0.0
    %796 = vmatpush2.msra.mxu0 0.0
    %797 = vmatprep.subr.mxu0 0.0
    %798 = vmatpush2.msra.mxu0 0.0
    %799 = vmatprep.subr.mxu0 0.0
    %800 = vmatpush2.msra.mxu0 0.0
    %801 = vmatprep.subr.mxu0 0.0
    %802 = vmatpush2.msra.mxu0 0.0
    %803 = vmatprep.subr.mxu0 0.0
    %804 = vmatpush2.msra.mxu0 0.0
    %805 = vmatprep.subr.mxu0 0.0
    %806 = vmatpush2.msra.mxu0 0.0
    %807 = vmatprep.subr.mxu0 0.0
    %808 = vmatpush2.msra.mxu0 0.0
    %809 = vmatprep.subr.mxu0 0.0
    %810 = vmatpush2.msra.mxu0 0.0
    %811 = vmatprep.subr.mxu0 0.0
    %812 = vmatpush2.msra.mxu0 0.0
    %813 = vmatprep.subr.mxu0 0.0
    %814 = vmatpush2.msra.mxu0 0.0
    %815 = vmatprep.subr.mxu0 0.0
    %816 = vmatpush2.msra.mxu0 0.0
    %817 = vmatprep.subr.mxu0 0.0
    %818 = vmatpush2.msra.mxu0 0.0
    %819 = vmatprep.subr.mxu0 0.0
    %820 = vmatpush2.msra.mxu0 0.0
    %821 = vmatprep.subr.mxu0 0.0
    %822 = vmatpush2.msra.mxu0 0.0
    %823 = vmatprep.subr.mxu0 0.0
    %824 = vmatpush2.msra.mxu0 0.0
    %825 = vmatprep.mubr.f32.mxu0 0.0
    %826 = vmatmul.mubr.f32.gmra.mxu0 %v759
    %v827 = vpop.f32.mrf.mxu0
    %v828 = vadd.f32 0.0, %v827
    %v829 = vpop.f32.mrf.mxu0
    %830 = vdwg.mxu0
    %v831 = vadd.f32 %v758, %v828
    %v832 = vxor.u32 %v831, 2147483648
    %v833 = vmul.f32 %v832, 1.442695
    %v834 = vpow.pop %v833
    %v835 = vadd.f32 %v834, 1.0
    %v836 = vrcp.pop %v835
    %v837 = vmul.f32 1.0, %v836
    %v838 = vtanh.pop %v831
    %v839 = vmul.f32 %v837, %v744
    %841 = vrot.lane.b32.xlu0 %v838, 64
    %v842 = vpop.permute.xlu0 %841
    %v844 = vmul.f32 %v837, %v842
    %846 = vrot.lane.b32.xlu0 %v844, 32
    %v847 = vpop.permute.xlu0 %846
    %v849 = vadd.f32 %v839, %v847
    %v850 = vtanh.pop %v849
    %852 = vrot.lane.b32.xlu0 %v850, 64
    %v853 = vpop.permute.xlu0 %852
    %v855 = vmul.f32 %v837, %v853
    %857 = vrot.lane.b32.xlu0 %v855, 32
    %v858 = vpop.permute.xlu0 %857
    %860 = vst.msk [vmem:[#allocation3 + $0x6] sm:$0x1] %vm228, %v858
    %861 = vst.msk [vmem:[#allocation3 + $0xd] sm:$0x2] %vm230, %v858
    %s862 = scalar_lea.vmem [#allocation2], 14
    %v863 = vld [vmem:[%s862] sm:$0x3]
    %v864 = vsel %vm37, %v858, 0
    %866 = vmatprep.subr.mxu0 0.0
    %867 = vmatpush1.msra.mxu0 0.0
    %868 = vmatprep.subr.mxu0 0.0
    %869 = vmatpush1.msra.mxu0 0.0
    %870 = vmatprep.subr.mxu0 0.0
    %871 = vmatpush1.msra.mxu0 0.0
    %872 = vmatprep.subr.mxu0 0.0
    %873 = vmatpush1.msra.mxu0 0.0
    %874 = vmatprep.subr.mxu0 0.0
    %875 = vmatpush1.msra.mxu0 0.0
    %876 = vmatprep.subr.mxu0 0.0
    %877 = vmatpush1.msra.mxu0 0.0
    %878 = vmatprep.subr.mxu0 0.0
    %879 = vmatpush1.msra.mxu0 0.0
    %880 = vmatprep.subr.mxu0 0.0
    %881 = vmatpush1.msra.mxu0 0.0
    %882 = vmatprep.subr.mxu0 0.0
    %883 = vmatpush1.msra.mxu0 0.0
    %884 = vmatprep.subr.mxu0 0.0
    %885 = vmatpush1.msra.mxu0 0.0
    %886 = vmatprep.subr.mxu0 0.0
    %887 = vmatpush1.msra.mxu0 0.0
    %888 = vmatprep.subr.mxu0 0.0
    %889 = vmatpush1.msra.mxu0 0.0
    %890 = vmatprep.subr.mxu0 0.0
    %891 = vmatpush1.msra.mxu0 %v124
    %892 = vmatprep.subr.mxu0 0.0
    %893 = vmatpush1.msra.mxu0 %v123
    %894 = vmatprep.subr.mxu0 0.0
    %895 = vmatpush1.msra.mxu0 %v122
    %896 = vmatprep.subr.mxu0 0.0
    %897 = vmatpush1.msra.mxu0 %v121
    %898 = vmatprep.subr.mxu0 0.0
    %899 = vmatpush2.msra.mxu0 0.0
    %900 = vmatprep.subr.mxu0 0.0
    %901 = vmatpush2.msra.mxu0 0.0
    %902 = vmatprep.subr.mxu0 0.0
    %903 = vmatpush2.msra.mxu0 0.0
    %904 = vmatprep.subr.mxu0 0.0
    %905 = vmatpush2.msra.mxu0 0.0
    %906 = vmatprep.subr.mxu0 0.0
    %907 = vmatpush2.msra.mxu0 0.0
    %908 = vmatprep.subr.mxu0 0.0
    %909 = vmatpush2.msra.mxu0 0.0
    %910 = vmatprep.subr.mxu0 0.0
    %911 = vmatpush2.msra.mxu0 0.0
    %912 = vmatprep.subr.mxu0 0.0
    %913 = vmatpush2.msra.mxu0 0.0
    %914 = vmatprep.subr.mxu0 0.0
    %915 = vmatpush2.msra.mxu0 0.0
    %916 = vmatprep.subr.mxu0 0.0
    %917 = vmatpush2.msra.mxu0 0.0
    %918 = vmatprep.subr.mxu0 0.0
    %919 = vmatpush2.msra.mxu0 0.0
    %920 = vmatprep.subr.mxu0 0.0
    %921 = vmatpush2.msra.mxu0 0.0
    %922 = vmatprep.subr.mxu0 0.0
    %923 = vmatpush2.msra.mxu0 0.0
    %924 = vmatprep.subr.mxu0 0.0
    %925 = vmatpush2.msra.mxu0 0.0
    %926 = vmatprep.subr.mxu0 0.0
    %927 = vmatpush2.msra.mxu0 0.0
    %928 = vmatprep.subr.mxu0 0.0
    %929 = vmatpush2.msra.mxu0 0.0
    %930 = vmatprep.mubr.f32.mxu0 0.0
    %931 = vmatmul.mubr.f32.gmra.mxu0 %v864
    %v932 = vpop.f32.mrf.mxu0
    %v933 = vadd.f32 0.0, %v932
    %v934 = vpop.f32.mrf.mxu0
    %935 = vdwg.mxu0
    %v936 = vadd.f32 %v863, %v933
    %v937 = vxor.u32 %v936, 2147483648
    %v938 = vmul.f32 %v937, 1.442695
    %v939 = vpow.pop %v938
    %v940 = vadd.f32 %v939, 1.0
    %v941 = vrcp.pop %v940
    %v942 = vmul.f32 1.0, %v941
    %v943 = vtanh.pop %v936
    %v944 = vmul.f32 %v942, %v849
    %946 = vrot.lane.b32.xlu0 %v943, 64
    %v947 = vpop.permute.xlu0 %946
    %v949 = vmul.f32 %v942, %v947
    %951 = vrot.lane.b32.xlu0 %v949, 32
    %v952 = vpop.permute.xlu0 %951
    %v954 = vadd.f32 %v944, %v952
    %v955 = vtanh.pop %v954
    %957 = vrot.lane.b32.xlu0 %v955, 64
    %v958 = vpop.permute.xlu0 %957
    %v960 = vmul.f32 %v942, %v958
    %962 = vrot.lane.b32.xlu0 %v960, 32
    %v963 = vpop.permute.xlu0 %962
    %965 = vst.msk [vmem:[#allocation3 + $0x7] sm:$0x1] %vm228, %v963
    %966 = vst.msk [vmem:[#allocation3 + $0xe] sm:$0x2] %vm230, %v963
    %v967 = vld [vmem:[#allocation3] sm:$0xff]
    %v968 = vld [vmem:[#allocation3 + $0x8] sm:$0xff]
    %v969 = vld [vmem:[%s4] sm:$0xff]
    %v970 = vld [vmem:[%s4 + $0x8] sm:$0xff]
    %v971 = vld [vmem:[%s4 + $0x10] sm:$0xff]
    %v972 = vld [vmem:[%s4 + $0x18] sm:$0xff]
    %v973 = vld [vmem:[%s5] sm:$0x1]
    %v975 = vlaneseq
    %v976 = vshrl.u32 %v975, 7
    %v977 = vsub.s32 0, %v976
    %v978 = vrot.slane %v973, %v977
    %v981 = vsel %vm37, %v967, 0
    %v984 = vsel %vm37, %v968, 0
    %986 = vmatprep.subr.mxu0 0.0
    %987 = vmatpush1.msra.mxu0 0.0
    %988 = vmatprep.subr.mxu0 0.0
    %989 = vmatpush1.msra.mxu0 0.0
    %990 = vmatprep.subr.mxu0 0.0
    %991 = vmatpush1.msra.mxu0 0.0
    %992 = vmatprep.subr.mxu0 0.0
    %993 = vmatpush1.msra.mxu0 0.0
    %994 = vmatprep.subr.mxu0 0.0
    %995 = vmatpush1.msra.mxu0 0.0
    %996 = vmatprep.subr.mxu0 0.0
    %997 = vmatpush1.msra.mxu0 0.0
    %998 = vmatprep.subr.mxu0 0.0
    %999 = vmatpush1.msra.mxu0 0.0
    %1000 = vmatprep.subr.mxu0 0.0
    %1001 = vmatpush1.msra.mxu0 0.0
    %1002 = vmatprep.subr.mxu0 0.0
    %1003 = vmatpush1.msra.mxu0 0.0
    %1004 = vmatprep.subr.mxu0 0.0
    %1005 = vmatpush1.msra.mxu0 0.0
    %1006 = vmatprep.subr.mxu0 0.0
    %1007 = vmatpush1.msra.mxu0 0.0
    %1008 = vmatprep.subr.mxu0 0.0
    %1009 = vmatpush1.msra.mxu0 0.0
    %1010 = vmatprep.subr.mxu0 0.0
    %1011 = vmatpush1.msra.mxu0 %v972
    %1012 = vmatprep.subr.mxu0 0.0
    %1013 = vmatpush1.msra.mxu0 %v971
    %1014 = vmatprep.subr.mxu0 0.0
    %1015 = vmatpush1.msra.mxu0 %v970
    %1016 = vmatprep.subr.mxu0 0.0
    %1017 = vmatpush1.msra.mxu0 %v969
    %1018 = vmatprep.subr.mxu0 0.0
    %1019 = vmatpush2.msra.mxu0 0.0
    %1020 = vmatprep.subr.mxu0 0.0
    %1021 = vmatpush2.msra.mxu0 0.0
    %1022 = vmatprep.subr.mxu0 0.0
    %1023 = vmatpush2.msra.mxu0 0.0
    %1024 = vmatprep.subr.mxu0 0.0
    %1025 = vmatpush2.msra.mxu0 0.0
    %1026 = vmatprep.subr.mxu0 0.0
    %1027 = vmatpush2.msra.mxu0 0.0
    %1028 = vmatprep.subr.mxu0 0.0
    %1029 = vmatpush2.msra.mxu0 0.0
    %1030 = vmatprep.subr.mxu0 0.0
    %1031 = vmatpush2.msra.mxu0 0.0
    %1032 = vmatprep.subr.mxu0 0.0
    %1033 = vmatpush2.msra.mxu0 0.0
    %1034 = vmatprep.subr.mxu0 0.0
    %1035 = vmatpush2.msra.mxu0 0.0
    %1036 = vmatprep.subr.mxu0 0.0
    %1037 = vmatpush2.msra.mxu0 0.0
    %1038 = vmatprep.subr.mxu0 0.0
    %1039 = vmatpush2.msra.mxu0 0.0
    %1040 = vmatprep.subr.mxu0 0.0
    %1041 = vmatpush2.msra.mxu0 0.0
    %1042 = vmatprep.subr.mxu0 0.0
    %1043 = vmatpush2.msra.mxu0 0.0
    %1044 = vmatprep.subr.mxu0 0.0
    %1045 = vmatpush2.msra.mxu0 0.0
    %1046 = vmatprep.subr.mxu0 0.0
    %1047 = vmatpush2.msra.mxu0 0.0
    %1048 = vmatprep.subr.mxu0 0.0
    %1049 = vmatpush2.msra.mxu0 0.0
    %1050 = vmatprep.mubr.f32.mxu0 0.0
    %1051 = vmatmul.mubr.f32.gmra.mxu0 %v981
    %v1052 = vpop.f32.mrf.mxu0
    %v1053 = vadd.f32 %v978, %v1052
    %v1054 = vpop.f32.mrf.mxu0
    %1055 = vmatprep.mubr.f32.mxu0 0.0
    %1056 = vmatmul.mubr.f32.gmra.mxu0 %v984
    %v1057 = vpop.f32.mrf.mxu0
    %v1058 = vadd.f32 %v978, %v1057
    %v1059 = vpop.f32.mrf.mxu0
    %1060 = vdwg.mxu0
    %1061 = vst [vmem:[#allocation4] sm:$0xff] %v1053
    %1062 = vst [vmem:[#allocation4 + $0x8] sm:$0xff] %v1058
    // Predicated region
    $region26: #{decoder_forward.1} parent=1 // pred_check
      _
    $region27: #{decoder_forward.1} parent=1 // pred_check_branch
      %1064 = sbr.rel (0) target = $region29
    $region28: #{decoder_forward.1} parent=1 // pred_region
      %s1066 = ssub.s32 256, 256
      %1067 = vsyncadd [#allocation5], %s1066
      %s1068 = sshll.u32 [#allocation4], 4
      %s1069 = int_to_ptr.vmem [resolvable:$true] %s1068
      %1074 = dma.vmem_to_hbm [thread:$0]  %s1069, 256, %s6, [#allocation5], 128, 128, 8
    $region29: #{decoder_forward.1} parent=1 // pred_fallthru
      _
    // Predicated region
    $region30: #{decoder_forward.1} parent=1 // pred_check
      _
    $region31: #{decoder_forward.1} parent=1 // pred_check_branch
      %1076 = sbr.rel (0) target = $region33
    $region32: #{decoder_forward.1} parent=1 // pred_region
      %1077 = dma.done [#allocation5], 256
    $region33: #{decoder_forward.1} parent=1 // pred_fallthru
      _
    %1078 = vsyncpa [#allocation5], 1

</llo_original>
